<compile_context>
chip_gen: v5e
topology: v5e:2x2
jax: 0.10.0
libtpu: 0.0.40
codegen_flags: <defaults>
</compile_context>

<pallas_src>
import functools

import jax
import jax.numpy as jnp
from jax.experimental import pallas as pl
from jax.experimental.pallas import tpu as pltpu


def _round_up(x, m):
    return (x + m - 1) // m * m


def _res2_fused_kernel(x_ref, w1_ref, b1_ref, w2_ref, b2_ref, o_ref,
                       xb1_ref, xb2_ref, *,
                       NB, K, p, Wr, L1, L2, T, H2, W2, H3, Cout):
    """NB images per step; both conv+BN stages fused; intermediate in VMEM.

    Flat padded layout (row stride Wr for every layer, image interior at row
    offset p / column offset p of each per-image region):
      x_ref:   (NB, Cin, L1)       host-padded input images, L1 = (H1+2p)*Wr
      w1_ref:  (K*K, Cmid_p, Cin)  per-tap conv1 weights (BN1 scale folded in)
      b1_ref:  (Cmid_p, 1)         folded BN1 bias (f32)
      w2_ref:  (K*K, Cout_p, Cmid_p), b2_ref: (Cout_p, 1)
      o_ref:   (NB, Cout, H3*Wr)   lane-dense output slab
      xb1_ref: (Cin,    NB*L1 + T) channel-major work buffer, layer-1 input
      xb2_ref: (Cmid_p, NB*L2 + T) work buffer, layer-2 input (never hits HBM)
    For tap (kh, kw) the RHS of the matmul is the contiguous slice
    buf[:, kh*Wr+kw : kh*Wr+kw + NB*L] covering all NB images at once.
    """
    cdt = xb1_ref.dtype
    Cmid_p = xb2_ref.shape[0]

    # Stage the NB padded images channel-major: one contiguous store each.
    for b in range(NB):
        xb1_ref[:, b * L1:(b + 1) * L1] = x_ref[b]
    # Zero the tiny read-overhang tails so junk lanes can never be NaN.
    if T > 0:
        xb1_ref[:, NB * L1:] = jnp.zeros((xb1_ref.shape[0], T), cdt)
        xb2_ref[:, NB * L2:] = jnp.zeros((Cmid_p, T), cdt)

    # Zero only xb2's top/bottom pad rows per image.  The interior rows and
    # their left/right pad columns are fully (re)written by the slab store
    # below, so nothing relies on scratch contents from previous grid steps.
    if p > 0:
        head = p * Wr + p                      # top pad rows + row-p left pad
        for b in range(NB):
            base = b * L2
            xb2_ref[:, base:base + head] = jnp.zeros((Cmid_p, head), cdt)
            xb2_ref[:, base + (p + H2) * Wr:base + L2] = jnp.zeros(
                (Cmid_p, p * Wr), cdt)

    def conv(buf_ref, w_ref, n_lanes):
        # K*K accumulating per-tap matmuls (no patches buffer, no masks).
        acc = None
        for kh in range(K):
            for kw in range(K):
                d = kh * Wr + kw
                part = jnp.dot(w_ref[kh * K + kw],
                               buf_ref[:, d:d + n_lanes],
                               preferred_element_type=jnp.float32)
                acc = part if acc is None else acc + part
        return acc

    # ---- layer 1: conv1 (BN1 scale folded into w1) + bias + ReLU ------------
    acc1 = conv(xb1_ref, w1_ref, NB * L1)              # (Cmid_p, NB*L1) f32
    y1 = jnp.maximum(acc1 + b1_ref[...], 0.0)
    if p > 0:
        # Junk columns land in xb2's pad region, which must stay zero.
        col = jax.lax.broadcasted_iota(jnp.int32, y1.shape, 1) % Wr
        y1 = jnp.where(col < W2, y1, 0.0)
    y1 = y1.astype(cdt)
    dst0 = p * (Wr + 1)
    for b in range(NB):                                # drop junk rows, place
        xb2_ref[:, b * L2 + dst0:b * L2 + dst0 + H2 * Wr] = \
            y1[:, b * L1:b * L1 + H2 * Wr]             # interior of image b

    # ---- layer 2: conv2 (BN2 scale folded into w2) + bias -------------------
    acc2 = conv(xb2_ref, w2_ref, NB * L2)              # (Cout_p, NB*L2) f32
    y2 = (acc2 + b2_ref[...]).astype(o_ref.dtype)
    for b in range(NB):
        o_ref[b] = y2[:Cout, b * L2:b * L2 + H3 * Wr]


def _fold_bn(conv_bias, gamma, beta, mean, var, eps=1e-5):
    scale = gamma / jnp.sqrt(var + eps)
    bias = beta + (conv_bias - mean) * scale
    return scale, bias


def res2_forward(x_nchw, params, *, padding, compute_dtype=jnp.bfloat16,
                 out_dtype=None, images_per_step=None):
    """Res2.forward: bn2(conv2(relu(bn1(conv1(x))))), NCHW in / NCHW out."""
    N, Cin, H1, W1 = x_nchw.shape
    Cmid, _, K, _ = params["w1"].shape
    Cout = params["w2"].shape[0]
    p = int(padding)
    if out_dtype is None:
        out_dtype = x_nchw.dtype

    H2, W2 = H1 + 2 * p - K + 1, W1 + 2 * p - K + 1
    H3, W3 = H2 + 2 * p - K + 1, W2 + 2 * p - K + 1
    assert min(H2, W2, H3, W3) > 0, "output spatial size must be positive"

    # Common row stride: horizontal padding is part of the stride -> mask-free
    # taps.  Per-image flat strides for the two work buffers + overhang tail.
    Wr = max(W1, W2) + 2 * p
    Hp1, Hp2 = H1 + 2 * p, H2 + 2 * p
    L1, L2 = Hp1 * Wr, Hp2 * Wr
    T = (K - 1) * (Wr + 1)

    # Sublane-tile-aligned output-channel counts for the two matmuls.
    itemsize = jnp.dtype(compute_dtype).itemsize
    sub = 16 if itemsize == 2 else 8
    Cmid_p, Cout_p = _round_up(Cmid, sub), _round_up(Cout, sub)

    # Images per grid step: amortize per-step overhead, cap by a VMEM budget,
    # and keep >=2 parallel grid entries when N >= 2 (v7x has 2 TensorCores).
    per_img = (Cin * L1 + Cmid_p * L2) * itemsize * 3 + Cout * H3 * Wr * 8
    if images_per_step is None:
        if N <= 2:
            images_per_step = 1
        else:
            cap = max(1, min(N // 2, 8, (8 << 20) // max(per_img, 1)))
            images_per_step = next(nb for nb in range(cap, 0, -1) if N % nb == 0)
    NB = int(images_per_step)
    assert N % NB == 0, "images_per_step must divide the batch size"

    # ---- host-side prep: one fused pad+cast of the input, tiny weight prep --
    x_pad = jnp.pad(x_nchw.astype(compute_dtype),
                    ((0, 0), (0, 0), (p, Hp1 - H1 - p), (p, Wr - W1 - p)))
    x_prep = x_pad.reshape(N, Cin, L1)

    s1, b1 = _fold_bn(params["b1"], params["g1"], params["beta1"],
                      params["m1"], params["v1"])
    s2, b2 = _fold_bn(params["b2"], params["g2"], params["beta2"],
                      params["m2"], params["v2"])
    # (O, I, Kh, Kw) -> (Kh*Kw, O_pad, I): one per-tap weight matrix, with the
    # BN scale folded into the output channels and zero-padded extra rows/cols.
    w1t = jnp.transpose(params["w1"] * s1[:, None, None, None], (2, 3, 0, 1))
    w1t = jnp.pad(w1t.reshape(K * K, Cmid, Cin),
                  ((0, 0), (0, Cmid_p - Cmid), (0, 0))).astype(compute_dtype)
    w2t = jnp.transpose(params["w2"] * s2[:, None, None, None], (2, 3, 0, 1))
    w2t = jnp.pad(w2t.reshape(K * K, Cout, Cmid),
                  ((0, 0), (0, Cout_p - Cout), (0, Cmid_p - Cmid))
                  ).astype(compute_dtype)
    b1p = jnp.pad(b1, (0, Cmid_p - Cmid))[:, None].astype(jnp.float32)
    b2p = jnp.pad(b2, (0, Cout_p - Cout))[:, None].astype(jnp.float32)

    kernel = functools.partial(
        _res2_fused_kernel, NB=NB, K=K, p=p, Wr=Wr, L1=L1, L2=L2, T=T,
        H2=H2, W2=W2, H3=H3, Cout=Cout)

    flops = 2 * N * K * K * Wr * (H2 * Cin * Cmid_p + H3 * Cmid_p * Cout_p)
    out_itemsize = jnp.dtype(out_dtype).itemsize
    bytes_accessed = (x_prep.size * itemsize
                      + (w1t.size + w2t.size) * itemsize
                      + (Cmid_p + Cout_p) * 4
                      + N * Cout * H3 * Wr * out_itemsize)

    # VMEM budget: scratch + double-buffered I/O blocks + weights (+ slack).
    vmem_est = ((Cin * (NB * L1 + T) + Cmid_p * (NB * L2 + T)) * itemsize
                + 2 * NB * Cin * L1 * itemsize
                + 2 * NB * Cout * H3 * Wr * out_itemsize
                + 2 * (w1t.size + w2t.size) * itemsize + 4096)
    vmem_limit = int(min(100 << 20, max(32 << 20, 4 * vmem_est)))

    out_flat = pl.pallas_call(
        kernel,
        out_shape=jax.ShapeDtypeStruct((N, Cout, H3 * Wr), out_dtype),
        grid=(N // NB,),
        in_specs=[
            pl.BlockSpec((NB, Cin, L1), lambda g: (g, 0, 0)),
            pl.BlockSpec((K * K, Cmid_p, Cin), lambda g: (0, 0, 0)),
            pl.BlockSpec((Cmid_p, 1), lambda g: (0, 0)),
            pl.BlockSpec((K * K, Cout_p, Cmid_p), lambda g: (0, 0, 0)),
            pl.BlockSpec((Cout_p, 1), lambda g: (0, 0)),
        ],
        out_specs=pl.BlockSpec((NB, Cout, H3 * Wr), lambda g: (g, 0, 0)),
        scratch_shapes=[pltpu.VMEM((Cin, NB * L1 + T), compute_dtype),
                        pltpu.VMEM((Cmid_p, NB * L2 + T), compute_dtype)],
        compiler_params=pltpu.CompilerParams(
            dimension_semantics=("parallel",),
            vmem_limit_bytes=vmem_limit),
        cost_estimate=pl.CostEstimate(
            flops=flops, transcendentals=0, bytes_accessed=bytes_accessed),
    )(x_prep, w1t, b1p, w2t, b2p)

    out = out_flat.reshape(N, Cout, H3, Wr)
    if Wr != W3:
        out = out[:, :, :, :W3]              # strip internal junk columns
    return out


# ---------------- pure-JAX reference (for correctness check) ----------------
def _ref_forward(x_nchw, params, padding, eps=1e-5):
    def conv(x, w_oihw, b):
        y = jax.lax.conv_general_dilated(
            x, w_oihw, window_strides=(1, 1),
            padding=[(padding, padding), (padding, padding)],
            dimension_numbers=("NCHW", "OIHW", "NCHW"))
        return y + b[None, :, None, None]

    def bn(x, g, bt, m, v):
        return (x - m[None, :, None, None]) / jnp.sqrt(v[None, :, None, None] + eps) \
            * g[None, :, None, None] + bt[None, :, None, None]

    y = jax.nn.relu(bn(conv(x_nchw, params["w1"], params["b1"]),
                       params["g1"], params["beta1"], params["m1"], params["v1"]))
    y = bn(conv(y, params["w2"], params["b2"]),
           params["g2"], params["beta2"], params["m2"], params["v2"])
    return y


if __name__ == "__main__":
    N, Cin, H, W = 2, 4, 16, 16
    Cmid, K, PAD = 8, 3, 1

    key = jax.random.PRNGKey(0)
    ks = jax.random.split(key, 11)

    params = {
        # conv1: (inter, in, K, K) ; conv2: (in, inter, K, K) — PyTorch OIHW
        "w1": jax.random.normal(ks[0], (Cmid, Cin, K, K), jnp.float32) * 0.1,
        "b1": jax.random.normal(ks[1], (Cmid,), jnp.float32) * 0.1,
        "g1": 1.0 + 0.1 * jax.random.normal(ks[2], (Cmid,), jnp.float32),
        "beta1": 0.1 * jax.random.normal(ks[3], (Cmid,), jnp.float32),
        "m1": 0.1 * jax.random.normal(ks[4], (Cmid,), jnp.float32),
        "v1": 1.0 + 0.1 * jnp.abs(jax.random.normal(ks[5], (Cmid,), jnp.float32)),

        "w2": jax.random.normal(ks[6], (Cin, Cmid, K, K), jnp.float32) * 0.1,
        "b2": jax.random.normal(ks[7], (Cin,), jnp.float32) * 0.1,
        "g2": 1.0 + 0.1 * jax.random.normal(ks[8], (Cin,), jnp.float32),
        "beta2": 0.1 * jax.random.normal(ks[9], (Cin,), jnp.float32),
        "m2": 0.1 * jax.random.normal(ks[10], (Cin,), jnp.float32),
        "v2": 1.0 + 0.1 * jnp.abs(jax.random.normal(ks[0], (Cin,), jnp.float32)),
    }

    x = jax.random.normal(jax.random.PRNGKey(42), (N, Cin, H, W), jnp.float32)

    fwd = jax.jit(res2_forward,
                  static_argnames=("padding", "compute_dtype", "out_dtype",
                                   "images_per_step"))

    ref = jax.block_until_ready(_ref_forward(x, params, PAD))

    # 1) default bf16 MXU operands (f32 accumulation), 'same' conv.
    out = jax.block_until_ready(fwd(x, params, padding=PAD))
    assert out.shape == (N, Cin, H, W), out.shape
    assert jnp.allclose(out, ref, atol=5e-2, rtol=5e-2), \
        f"bf16 max abs err {jnp.max(jnp.abs(out - ref))}"

    # 2) f32 operands — tight tolerance.
    out32 = jax.block_until_ready(
        fwd(x, params, padding=PAD, compute_dtype=jnp.float32))
    assert jnp.allclose(out32, ref, atol=1e-4, rtol=1e-4), \
        f"f32 max abs err {jnp.max(jnp.abs(out32 - ref))}"

    # 3) general padding path (padding=0 -> shrinking spatial dims).
    out_p0 = jax.block_until_ready(
        fwd(x, params, padding=0, compute_dtype=jnp.float32))
    ref_p0 = jax.block_until_ready(_ref_forward(x, params, 0))
    assert out_p0.shape == ref_p0.shape == (N, Cin, H - 4, W - 4), out_p0.shape
    assert jnp.allclose(out_p0, ref_p0, atol=1e-4, rtol=1e-4), \
        f"pad0 max abs err {jnp.max(jnp.abs(out_p0 - ref_p0))}"

    # 4) multi-image-per-step path (N=8 -> 4 images per grid step, 2 steps).
    x8 = jax.random.normal(jax.random.PRNGKey(7), (8, Cin, H, W), jnp.float32)
    out8 = jax.block_until_ready(
        fwd(x8, params, padding=PAD, compute_dtype=jnp.float32))
    ref8 = jax.block_until_ready(_ref_forward(x8, params, PAD))
    assert out8.shape == (8, Cin, H, W), out8.shape
    assert jnp.allclose(out8, ref8, atol=1e-4, rtol=1e-4), \
        f"batched max abs err {jnp.max(jnp.abs(out8 - ref8))}"

    print("KERNEL_OK")
</pallas_src>

<mosaic_0001>
module attributes {stable_mosaic.version = 11 : i64} {
  func.func @_res2_fused_kernel(%arg0: i32, %arg1: memref<1x4x324xbf16, #tpu.memory_space<vmem>>, %arg2: memref<9x16x4xbf16, #tpu.memory_space<vmem>>, %arg3: memref<16x1xf32, #tpu.memory_space<vmem>>, %arg4: memref<9x16x16xbf16, #tpu.memory_space<vmem>>, %arg5: memref<16x1xf32, #tpu.memory_space<vmem>>, %arg6: memref<1x4x288xf32, #tpu.memory_space<vmem>>, %arg7: memref<4x362xbf16, #tpu.memory_space<vmem>>, %arg8: memref<16x362xbf16, #tpu.memory_space<vmem>>) attributes {dimension_semantics = [#tpu.dimension_semantics<parallel>], iteration_bounds = array<i64: 2>, scalar_prefetch = 0 : i64, scratch_operands = 2 : i64, tpu.core_type = #tpu.core_type<tc>, window_params = [{transform_indices = @transform_0, window_bounds = array<i64: 1, 4, 324>}, {pipeline_mode = #tpu.pipeline_mode<synchronous>, transform_indices = @transform_1, window_bounds = array<i64: 9, 16, 4>}, {pipeline_mode = #tpu.pipeline_mode<synchronous>, transform_indices = @transform_2, window_bounds = array<i64: 16, 1>}, {pipeline_mode = #tpu.pipeline_mode<synchronous>, transform_indices = @transform_3, window_bounds = array<i64: 9, 16, 16>}, {pipeline_mode = #tpu.pipeline_mode<synchronous>, transform_indices = @transform_4, window_bounds = array<i64: 16, 1>}, {transform_indices = @transform_5, window_bounds = array<i64: 1, 4, 288>}]} {
    %c0 = arith.constant 0 : index
    %c0_0 = arith.constant 0 : index
    %c0_1 = arith.constant 0 : index
    %0 = vector.load %arg1[%c0, %c0_0, %c0_1] : memref<1x4x324xbf16, #tpu.memory_space<vmem>>, vector<1x4x324xbf16>
    %1 = vector.shape_cast %0 : vector<1x4x324xbf16> to vector<4x324xbf16>
    %c0_2 = arith.constant 0 : index
    %c0_3 = arith.constant 0 : index
    %2 = vector.load %arg7[%c0_2, %c0_3] : memref<4x362xbf16, #tpu.memory_space<vmem>>, vector<4x324xbf16>
    tpu.vector_store %arg7[%c0_2, %c0_3], %1 {strides = array<i32>} : memref<4x362xbf16, #tpu.memory_space<vmem>>, vector<4x324xbf16>,
    %cst = arith.constant 0.000000e+00 : bf16
    %3 = vector.broadcast %cst : bf16 to vector<4x38xbf16>
    %c0_4 = arith.constant 0 : index
    %c324 = arith.constant 324 : index
    %4 = vector.load %arg7[%c0_4, %c324] : memref<4x362xbf16, #tpu.memory_space<vmem>>, vector<4x38xbf16>
    tpu.vector_store %arg7[%c0_4, %c324], %3 {strides = array<i32>} : memref<4x362xbf16, #tpu.memory_space<vmem>>, vector<4x38xbf16>,
    %cst_5 = arith.constant 0.000000e+00 : bf16
    %5 = vector.broadcast %cst_5 : bf16 to vector<16x38xbf16>
    %c0_6 = arith.constant 0 : index
    %c324_7 = arith.constant 324 : index
    %6 = vector.load %arg8[%c0_6, %c324_7] : memref<16x362xbf16, #tpu.memory_space<vmem>>, vector<16x38xbf16>
    tpu.vector_store %arg8[%c0_6, %c324_7], %5 {strides = array<i32>} : memref<16x362xbf16, #tpu.memory_space<vmem>>, vector<16x38xbf16>,
    %cst_8 = arith.constant 0.000000e+00 : bf16
    %7 = vector.broadcast %cst_8 : bf16 to vector<16x19xbf16>
    %c0_9 = arith.constant 0 : index
    %c0_10 = arith.constant 0 : index
    %8 = vector.load %arg8[%c0_9, %c0_10] : memref<16x362xbf16, #tpu.memory_space<vmem>>, vector<16x19xbf16>
    tpu.vector_store %arg8[%c0_9, %c0_10], %7 {strides = array<i32>} : memref<16x362xbf16, #tpu.memory_space<vmem>>, vector<16x19xbf16>,
    %cst_11 = arith.constant 0.000000e+00 : bf16
    %9 = vector.broadcast %cst_11 : bf16 to vector<16x18xbf16>
    %c0_12 = arith.constant 0 : index
    %c306 = arith.constant 306 : index
    %10 = vector.load %arg8[%c0_12, %c306] : memref<16x362xbf16, #tpu.memory_space<vmem>>, vector<16x18xbf16>
    tpu.vector_store %arg8[%c0_12, %c306], %9 {strides = array<i32>} : memref<16x362xbf16, #tpu.memory_space<vmem>>, vector<16x18xbf16>,
    %c0_13 = arith.constant 0 : index
    %c0_14 = arith.constant 0 : index
    %c0_15 = arith.constant 0 : index
    %11 = vector.load %arg2[%c0_13, %c0_14, %c0_15] : memref<9x16x4xbf16, #tpu.memory_space<vmem>>, vector<1x16x4xbf16>
    %12 = vector.shape_cast %11 : vector<1x16x4xbf16> to vector<16x4xbf16>
    %c0_16 = arith.constant 0 : index
    %c0_17 = arith.constant 0 : index
    %13 = vector.load %arg7[%c0_16, %c0_17] : memref<4x362xbf16, #tpu.memory_space<vmem>>, vector<4x324xbf16>
    %cst_18 = arith.constant dense<0.000000e+00> : vector<16x324xf32>
    %14 = tpu.matmul %12, %13, %cst_18 {dimension_numbers = #tpu.dot_dimension_numbers<[1], [0], [0], [1], [0, 0, 1, 1], [], []>} : vector<16x4xbf16>, vector<4x324xbf16>, vector<16x324xf32> -> vector<16x324xf32>
    %c1 = arith.constant 1 : index
    %c0_19 = arith.constant 0 : index
    %c0_20 = arith.constant 0 : index
    %15 = vector.load %arg2[%c1, %c0_19, %c0_20] : memref<9x16x4xbf16, #tpu.memory_space<vmem>>, vector<1x16x4xbf16>
    %16 = vector.shape_cast %15 : vector<1x16x4xbf16> to vector<16x4xbf16>
    %c0_21 = arith.constant 0 : index
    %c1_22 = arith.constant 1 : index
    %17 = vector.load %arg7[%c0_21, %c1_22] : memref<4x362xbf16, #tpu.memory_space<vmem>>, vector<4x324xbf16>
    %cst_23 = arith.constant dense<0.000000e+00> : vector<16x324xf32>
    %18 = tpu.matmul %16, %17, %cst_23 {dimension_numbers = #tpu.dot_dimension_numbers<[1], [0], [0], [1], [0, 0, 1, 1], [], []>} : vector<16x4xbf16>, vector<4x324xbf16>, vector<16x324xf32> -> vector<16x324xf32>
    %19 = arith.addf %14, %18 : vector<16x324xf32>
    %c2 = arith.constant 2 : index
    %c0_24 = arith.constant 0 : index
    %c0_25 = arith.constant 0 : index
    %20 = vector.load %arg2[%c2, %c0_24, %c0_25] : memref<9x16x4xbf16, #tpu.memory_space<vmem>>, vector<1x16x4xbf16>
    %21 = vector.shape_cast %20 : vector<1x16x4xbf16> to vector<16x4xbf16>
    %c0_26 = arith.constant 0 : index
    %c2_27 = arith.constant 2 : index
    %22 = vector.load %arg7[%c0_26, %c2_27] : memref<4x362xbf16, #tpu.memory_space<vmem>>, vector<4x324xbf16>
    %cst_28 = arith.constant dense<0.000000e+00> : vector<16x324xf32>
    %23 = tpu.matmul %21, %22, %cst_28 {dimension_numbers = #tpu.dot_dimension_numbers<[1], [0], [0], [1], [0, 0, 1, 1], [], []>} : vector<16x4xbf16>, vector<4x324xbf16>, vector<16x324xf32> -> vector<16x324xf32>
    %24 = arith.addf %19, %23 : vector<16x324xf32>
    %c3 = arith.constant 3 : index
    %c0_29 = arith.constant 0 : index
    %c0_30 = arith.constant 0 : index
    %25 = vector.load %arg2[%c3, %c0_29, %c0_30] : memref<9x16x4xbf16, #tpu.memory_space<vmem>>, vector<1x16x4xbf16>
    %26 = vector.shape_cast %25 : vector<1x16x4xbf16> to vector<16x4xbf16>
    %c0_31 = arith.constant 0 : index
    %c18 = arith.constant 18 : index
    %27 = vector.load %arg7[%c0_31, %c18] : memref<4x362xbf16, #tpu.memory_space<vmem>>, vector<4x324xbf16>
    %cst_32 = arith.constant dense<0.000000e+00> : vector<16x324xf32>
    %28 = tpu.matmul %26, %27, %cst_32 {dimension_numbers = #tpu.dot_dimension_numbers<[1], [0], [0], [1], [0, 0, 1, 1], [], []>} : vector<16x4xbf16>, vector<4x324xbf16>, vector<16x324xf32> -> vector<16x324xf32>
    %29 = arith.addf %24, %28 : vector<16x324xf32>
    %c4 = arith.constant 4 : index
    %c0_33 = arith.constant 0 : index
    %c0_34 = arith.constant 0 : index
    %30 = vector.load %arg2[%c4, %c0_33, %c0_34] : memref<9x16x4xbf16, #tpu.memory_space<vmem>>, vector<1x16x4xbf16>
    %31 = vector.shape_cast %30 : vector<1x16x4xbf16> to vector<16x4xbf16>
    %c0_35 = arith.constant 0 : index
    %c19 = arith.constant 19 : index
    %32 = vector.load %arg7[%c0_35, %c19] : memref<4x362xbf16, #tpu.memory_space<vmem>>, vector<4x324xbf16>
    %cst_36 = arith.constant dense<0.000000e+00> : vector<16x324xf32>
    %33 = tpu.matmul %31, %32, %cst_36 {dimension_numbers = #tpu.dot_dimension_numbers<[1], [0], [0], [1], [0, 0, 1, 1], [], []>} : vector<16x4xbf16>, vector<4x324xbf16>, vector<16x324xf32> -> vector<16x324xf32>
    %34 = arith.addf %29, %33 : vector<16x324xf32>
    %c5 = arith.constant 5 : index
    %c0_37 = arith.constant 0 : index
    %c0_38 = arith.constant 0 : index
    %35 = vector.load %arg2[%c5, %c0_37, %c0_38] : memref<9x16x4xbf16, #tpu.memory_space<vmem>>, vector<1x16x4xbf16>
    %36 = vector.shape_cast %35 : vector<1x16x4xbf16> to vector<16x4xbf16>
    %c0_39 = arith.constant 0 : index
    %c20 = arith.constant 20 : index
    %37 = vector.load %arg7[%c0_39, %c20] : memref<4x362xbf16, #tpu.memory_space<vmem>>, vector<4x324xbf16>
    %cst_40 = arith.constant dense<0.000000e+00> : vector<16x324xf32>
    %38 = tpu.matmul %36, %37, %cst_40 {dimension_numbers = #tpu.dot_dimension_numbers<[1], [0], [0], [1], [0, 0, 1, 1], [], []>} : vector<16x4xbf16>, vector<4x324xbf16>, vector<16x324xf32> -> vector<16x324xf32>
    %39 = arith.addf %34, %38 : vector<16x324xf32>
    %c6 = arith.constant 6 : index
    %c0_41 = arith.constant 0 : index
    %c0_42 = arith.constant 0 : index
    %40 = vector.load %arg2[%c6, %c0_41, %c0_42] : memref<9x16x4xbf16, #tpu.memory_space<vmem>>, vector<1x16x4xbf16>
    %41 = vector.shape_cast %40 : vector<1x16x4xbf16> to vector<16x4xbf16>
    %c0_43 = arith.constant 0 : index
    %c36 = arith.constant 36 : index
    %42 = vector.load %arg7[%c0_43, %c36] : memref<4x362xbf16, #tpu.memory_space<vmem>>, vector<4x324xbf16>
    %cst_44 = arith.constant dense<0.000000e+00> : vector<16x324xf32>
    %43 = tpu.matmul %41, %42, %cst_44 {dimension_numbers = #tpu.dot_dimension_numbers<[1], [0], [0], [1], [0, 0, 1, 1], [], []>} : vector<16x4xbf16>, vector<4x324xbf16>, vector<16x324xf32> -> vector<16x324xf32>
    %44 = arith.addf %39, %43 : vector<16x324xf32>
    %c7 = arith.constant 7 : index
    %c0_45 = arith.constant 0 : index
    %c0_46 = arith.constant 0 : index
    %45 = vector.load %arg2[%c7, %c0_45, %c0_46] : memref<9x16x4xbf16, #tpu.memory_space<vmem>>, vector<1x16x4xbf16>
    %46 = vector.shape_cast %45 : vector<1x16x4xbf16> to vector<16x4xbf16>
    %c0_47 = arith.constant 0 : index
    %c37 = arith.constant 37 : index
    %47 = vector.load %arg7[%c0_47, %c37] : memref<4x362xbf16, #tpu.memory_space<vmem>>, vector<4x324xbf16>
    %cst_48 = arith.constant dense<0.000000e+00> : vector<16x324xf32>
    %48 = tpu.matmul %46, %47, %cst_48 {dimension_numbers = #tpu.dot_dimension_numbers<[1], [0], [0], [1], [0, 0, 1, 1], [], []>} : vector<16x4xbf16>, vector<4x324xbf16>, vector<16x324xf32> -> vector<16x324xf32>
    %49 = arith.addf %44, %48 : vector<16x324xf32>
    %c8 = arith.constant 8 : index
    %c0_49 = arith.constant 0 : index
    %c0_50 = arith.constant 0 : index
    %50 = vector.load %arg2[%c8, %c0_49, %c0_50] : memref<9x16x4xbf16, #tpu.memory_space<vmem>>, vector<1x16x4xbf16>
    %51 = vector.shape_cast %50 : vector<1x16x4xbf16> to vector<16x4xbf16>
    %c0_51 = arith.constant 0 : index
    %c38 = arith.constant 38 : index
    %52 = vector.load %arg7[%c0_51, %c38] : memref<4x362xbf16, #tpu.memory_space<vmem>>, vector<4x324xbf16>
    %cst_52 = arith.constant dense<0.000000e+00> : vector<16x324xf32>
    %53 = tpu.matmul %51, %52, %cst_52 {dimension_numbers = #tpu.dot_dimension_numbers<[1], [0], [0], [1], [0, 0, 1, 1], [], []>} : vector<16x4xbf16>, vector<4x324xbf16>, vector<16x324xf32> -> vector<16x324xf32>
    %54 = arith.addf %49, %53 : vector<16x324xf32>
    %c0_53 = arith.constant 0 : index
    %c0_54 = arith.constant 0 : index
    %55 = vector.load %arg3[%c0_53, %c0_54] : memref<16x1xf32, #tpu.memory_space<vmem>>, vector<16x1xf32>
    %56 = vector.broadcast %55 : vector<16x1xf32> to vector<16x324xf32>
    %57 = arith.addf %54, %56 : vector<16x324xf32>
    %cst_55 = arith.constant 0.000000e+00 : f32
    %58 = vector.broadcast %cst_55 : f32 to vector<16x324xf32>
    %59 = arith.maximumf %57, %58 : vector<16x324xf32>
    %60 = tpu.iota {dimensions = array<i32: 1>} : vector<16x324xi32>
    %c18_i32 = arith.constant 18 : i32
    %c0_i32 = arith.constant 0 : i32
    %61 = arith.cmpi eq, %c18_i32, %c0_i32 : i32
    %c1_i32 = arith.constant 1 : i32
    %62 = arith.select %61, %c1_i32, %c18_i32 : i32
    %63 = vector.broadcast %62 : i32 to vector<16x324xi32>
    %64 = arith.remsi %60, %63 : vector<16x324xi32>
    %c0_i32_56 = arith.constant 0 : i32
    %65 = vector.broadcast %c0_i32_56 : i32 to vector<16x324xi32>
    %66 = arith.cmpi ne, %64, %65 : vector<16x324xi32>
    %c0_i32_57 = arith.constant 0 : i32
    %67 = vector.broadcast %c0_i32_57 : i32 to vector<16x324xi32>
    %68 = arith.cmpi slt, %64, %67 : vector<16x324xi32>
    %c0_i32_58 = arith.constant 0 : i32
    %69 = arith.cmpi slt, %62, %c0_i32_58 : i32
    %70 = vector.broadcast %69 : i1 to vector<16x324xi1>
    %71 = vector.broadcast %70 : vector<16x324xi1> to vector<16x324xi1>
    %72 = arith.xori %68, %71 : vector<16x324xi1>
    %73 = arith.andi %72, %66 : vector<16x324xi1>
    %74 = vector.broadcast %62 : i32 to vector<16x324xi32>
    %75 = arith.addi %64, %74 : vector<16x324xi32>
    %76 = arith.select %73, %75, %64 : vector<16x324xi1>, vector<16x324xi32>
    %c16_i32 = arith.constant 16 : i32
    %77 = vector.broadcast %c16_i32 : i32 to vector<16x324xi32>
    %78 = arith.cmpi slt, %76, %77 : vector<16x324xi32>
    %cst_59 = arith.constant 0.000000e+00 : f32
    %79 = vector.broadcast %cst_59 : f32 to vector<16x324xf32>
    %80 = arith.select %78, %59, %79 : vector<16x324xi1>, vector<16x324xf32>
    %81 = arith.truncf %80 : vector<16x324xf32> to vector<16x324xbf16>
    %82 = vector.extract_strided_slice %81 {offsets = [0, 0], sizes = [16, 288], strides = [1, 1]} : vector<16x324xbf16> to vector<16x288xbf16>
    %c0_60 = arith.constant 0 : index
    %c19_61 = arith.constant 19 : index
    %83 = vector.load %arg8[%c0_60, %c19_61] : memref<16x362xbf16, #tpu.memory_space<vmem>>, vector<16x288xbf16>
    tpu.vector_store %arg8[%c0_60, %c19_61], %82 {strides = array<i32>} : memref<16x362xbf16, #tpu.memory_space<vmem>>, vector<16x288xbf16>,
    %c0_62 = arith.constant 0 : index
    %c0_63 = arith.constant 0 : index
    %c0_64 = arith.constant 0 : index
    %84 = vector.load %arg4[%c0_62, %c0_63, %c0_64] : memref<9x16x16xbf16, #tpu.memory_space<vmem>>, vector<1x16x16xbf16>
    %85 = vector.shape_cast %84 : vector<1x16x16xbf16> to vector<16x16xbf16>
    %c0_65 = arith.constant 0 : index
    %c0_66 = arith.constant 0 : index
    %86 = vector.load %arg8[%c0_65, %c0_66] : memref<16x362xbf16, #tpu.memory_space<vmem>>, vector<16x324xbf16>
    %cst_67 = arith.constant dense<0.000000e+00> : vector<16x324xf32>
    %87 = tpu.matmul %85, %86, %cst_67 {dimension_numbers = #tpu.dot_dimension_numbers<[1], [0], [0], [1], [0, 0, 1, 1], [], []>} : vector<16x16xbf16>, vector<16x324xbf16>, vector<16x324xf32> -> vector<16x324xf32>
    %c1_68 = arith.constant 1 : index
    %c0_69 = arith.constant 0 : index
    %c0_70 = arith.constant 0 : index
    %88 = vector.load %arg4[%c1_68, %c0_69, %c0_70] : memref<9x16x16xbf16, #tpu.memory_space<vmem>>, vector<1x16x16xbf16>
    %89 = vector.shape_cast %88 : vector<1x16x16xbf16> to vector<16x16xbf16>
    %c0_71 = arith.constant 0 : index
    %c1_72 = arith.constant 1 : index
    %90 = vector.load %arg8[%c0_71, %c1_72] : memref<16x362xbf16, #tpu.memory_space<vmem>>, vector<16x324xbf16>
    %cst_73 = arith.constant dense<0.000000e+00> : vector<16x324xf32>
    %91 = tpu.matmul %89, %90, %cst_73 {dimension_numbers = #tpu.dot_dimension_numbers<[1], [0], [0], [1], [0, 0, 1, 1], [], []>} : vector<16x16xbf16>, vector<16x324xbf16>, vector<16x324xf32> -> vector<16x324xf32>
    %92 = arith.addf %87, %91 : vector<16x324xf32>
    %c2_74 = arith.constant 2 : index
    %c0_75 = arith.constant 0 : index
    %c0_76 = arith.constant 0 : index
    %93 = vector.load %arg4[%c2_74, %c0_75, %c0_76] : memref<9x16x16xbf16, #tpu.memory_space<vmem>>, vector<1x16x16xbf16>
    %94 = vector.shape_cast %93 : vector<1x16x16xbf16> to vector<16x16xbf16>
    %c0_77 = arith.constant 0 : index
    %c2_78 = arith.constant 2 : index
    %95 = vector.load %arg8[%c0_77, %c2_78] : memref<16x362xbf16, #tpu.memory_space<vmem>>, vector<16x324xbf16>
    %cst_79 = arith.constant dense<0.000000e+00> : vector<16x324xf32>
    %96 = tpu.matmul %94, %95, %cst_79 {dimension_numbers = #tpu.dot_dimension_numbers<[1], [0], [0], [1], [0, 0, 1, 1], [], []>} : vector<16x16xbf16>, vector<16x324xbf16>, vector<16x324xf32> -> vector<16x324xf32>
    %97 = arith.addf %92, %96 : vector<16x324xf32>
    %c3_80 = arith.constant 3 : index
    %c0_81 = arith.constant 0 : index
    %c0_82 = arith.constant 0 : index
    %98 = vector.load %arg4[%c3_80, %c0_81, %c0_82] : memref<9x16x16xbf16, #tpu.memory_space<vmem>>, vector<1x16x16xbf16>
    %99 = vector.shape_cast %98 : vector<1x16x16xbf16> to vector<16x16xbf16>
    %c0_83 = arith.constant 0 : index
    %c18_84 = arith.constant 18 : index
    %100 = vector.load %arg8[%c0_83, %c18_84] : memref<16x362xbf16, #tpu.memory_space<vmem>>, vector<16x324xbf16>
    %cst_85 = arith.constant dense<0.000000e+00> : vector<16x324xf32>
    %101 = tpu.matmul %99, %100, %cst_85 {dimension_numbers = #tpu.dot_dimension_numbers<[1], [0], [0], [1], [0, 0, 1, 1], [], []>} : vector<16x16xbf16>, vector<16x324xbf16>, vector<16x324xf32> -> vector<16x324xf32>
    %102 = arith.addf %97, %101 : vector<16x324xf32>
    %c4_86 = arith.constant 4 : index
    %c0_87 = arith.constant 0 : index
    %c0_88 = arith.constant 0 : index
    %103 = vector.load %arg4[%c4_86, %c0_87, %c0_88] : memref<9x16x16xbf16, #tpu.memory_space<vmem>>, vector<1x16x16xbf16>
    %104 = vector.shape_cast %103 : vector<1x16x16xbf16> to vector<16x16xbf16>
    %c0_89 = arith.constant 0 : index
    %c19_90 = arith.constant 19 : index
    %105 = vector.load %arg8[%c0_89, %c19_90] : memref<16x362xbf16, #tpu.memory_space<vmem>>, vector<16x324xbf16>
    %cst_91 = arith.constant dense<0.000000e+00> : vector<16x324xf32>
    %106 = tpu.matmul %104, %105, %cst_91 {dimension_numbers = #tpu.dot_dimension_numbers<[1], [0], [0], [1], [0, 0, 1, 1], [], []>} : vector<16x16xbf16>, vector<16x324xbf16>, vector<16x324xf32> -> vector<16x324xf32>
    %107 = arith.addf %102, %106 : vector<16x324xf32>
    %c5_92 = arith.constant 5 : index
    %c0_93 = arith.constant 0 : index
    %c0_94 = arith.constant 0 : index
    %108 = vector.load %arg4[%c5_92, %c0_93, %c0_94] : memref<9x16x16xbf16, #tpu.memory_space<vmem>>, vector<1x16x16xbf16>
    %109 = vector.shape_cast %108 : vector<1x16x16xbf16> to vector<16x16xbf16>
    %c0_95 = arith.constant 0 : index
    %c20_96 = arith.constant 20 : index
    %110 = vector.load %arg8[%c0_95, %c20_96] : memref<16x362xbf16, #tpu.memory_space<vmem>>, vector<16x324xbf16>
    %cst_97 = arith.constant dense<0.000000e+00> : vector<16x324xf32>
    %111 = tpu.matmul %109, %110, %cst_97 {dimension_numbers = #tpu.dot_dimension_numbers<[1], [0], [0], [1], [0, 0, 1, 1], [], []>} : vector<16x16xbf16>, vector<16x324xbf16>, vector<16x324xf32> -> vector<16x324xf32>
    %112 = arith.addf %107, %111 : vector<16x324xf32>
    %c6_98 = arith.constant 6 : index
    %c0_99 = arith.constant 0 : index
    %c0_100 = arith.constant 0 : index
    %113 = vector.load %arg4[%c6_98, %c0_99, %c0_100] : memref<9x16x16xbf16, #tpu.memory_space<vmem>>, vector<1x16x16xbf16>
    %114 = vector.shape_cast %113 : vector<1x16x16xbf16> to vector<16x16xbf16>
    %c0_101 = arith.constant 0 : index
    %c36_102 = arith.constant 36 : index
    %115 = vector.load %arg8[%c0_101, %c36_102] : memref<16x362xbf16, #tpu.memory_space<vmem>>, vector<16x324xbf16>
    %cst_103 = arith.constant dense<0.000000e+00> : vector<16x324xf32>
    %116 = tpu.matmul %114, %115, %cst_103 {dimension_numbers = #tpu.dot_dimension_numbers<[1], [0], [0], [1], [0, 0, 1, 1], [], []>} : vector<16x16xbf16>, vector<16x324xbf16>, vector<16x324xf32> -> vector<16x324xf32>
    %117 = arith.addf %112, %116 : vector<16x324xf32>
    %c7_104 = arith.constant 7 : index
    %c0_105 = arith.constant 0 : index
    %c0_106 = arith.constant 0 : index
    %118 = vector.load %arg4[%c7_104, %c0_105, %c0_106] : memref<9x16x16xbf16, #tpu.memory_space<vmem>>, vector<1x16x16xbf16>
    %119 = vector.shape_cast %118 : vector<1x16x16xbf16> to vector<16x16xbf16>
    %c0_107 = arith.constant 0 : index
    %c37_108 = arith.constant 37 : index
    %120 = vector.load %arg8[%c0_107, %c37_108] : memref<16x362xbf16, #tpu.memory_space<vmem>>, vector<16x324xbf16>
    %cst_109 = arith.constant dense<0.000000e+00> : vector<16x324xf32>
    %121 = tpu.matmul %119, %120, %cst_109 {dimension_numbers = #tpu.dot_dimension_numbers<[1], [0], [0], [1], [0, 0, 1, 1], [], []>} : vector<16x16xbf16>, vector<16x324xbf16>, vector<16x324xf32> -> vector<16x324xf32>
    %122 = arith.addf %117, %121 : vector<16x324xf32>
    %c8_110 = arith.constant 8 : index
    %c0_111 = arith.constant 0 : index
    %c0_112 = arith.constant 0 : index
    %123 = vector.load %arg4[%c8_110, %c0_111, %c0_112] : memref<9x16x16xbf16, #tpu.memory_space<vmem>>, vector<1x16x16xbf16>
    %124 = vector.shape_cast %123 : vector<1x16x16xbf16> to vector<16x16xbf16>
    %c0_113 = arith.constant 0 : index
    %c38_114 = arith.constant 38 : index
    %125 = vector.load %arg8[%c0_113, %c38_114] : memref<16x362xbf16, #tpu.memory_space<vmem>>, vector<16x324xbf16>
    %cst_115 = arith.constant dense<0.000000e+00> : vector<16x324xf32>
    %126 = tpu.matmul %124, %125, %cst_115 {dimension_numbers = #tpu.dot_dimension_numbers<[1], [0], [0], [1], [0, 0, 1, 1], [], []>} : vector<16x16xbf16>, vector<16x324xbf16>, vector<16x324xf32> -> vector<16x324xf32>
    %127 = arith.addf %122, %126 : vector<16x324xf32>
    %c0_116 = arith.constant 0 : index
    %c0_117 = arith.constant 0 : index
    %128 = vector.load %arg5[%c0_116, %c0_117] : memref<16x1xf32, #tpu.memory_space<vmem>>, vector<16x1xf32>
    %129 = vector.broadcast %128 : vector<16x1xf32> to vector<16x324xf32>
    %130 = arith.addf %127, %129 : vector<16x324xf32>
    %131 = vector.extract_strided_slice %130 {offsets = [0, 0], sizes = [4, 288], strides = [1, 1]} : vector<16x324xf32> to vector<4x288xf32>
    %c0_118 = arith.constant 0 : index
    %c0_119 = arith.constant 0 : index
    %c0_120 = arith.constant 0 : index
    %132 = vector.load %arg6[%c0_118, %c0_119, %c0_120] : memref<1x4x288xf32, #tpu.memory_space<vmem>>, vector<1x4x288xf32>
    %133 = vector.shape_cast %132 : vector<1x4x288xf32> to vector<4x288xf32>
    %134 = vector.shape_cast %131 : vector<4x288xf32> to vector<1x4x288xf32>
    tpu.vector_store %arg6[%c0_118, %c0_119, %c0_120], %134 {strides = array<i32>} : memref<1x4x288xf32, #tpu.memory_space<vmem>>, vector<1x4x288xf32>,
    return
  }
  func.func @transform_0(%arg0: i32) -> (i32, i32, i32) {
    %c0_i32 = arith.constant 0 : i32
    %c0_i32_0 = arith.constant 0 : i32
    %c0_i32_1 = arith.constant 0 : i32
    return %arg0, %c0_i32, %c0_i32_0 : i32, i32, i32
  }
  func.func @transform_1(%arg0: i32) -> (i32, i32, i32) {
    %c0_i32 = arith.constant 0 : i32
    %c0_i32_0 = arith.constant 0 : i32
    %c0_i32_1 = arith.constant 0 : i32
    %c0_i32_2 = arith.constant 0 : i32
    return %c0_i32, %c0_i32_0, %c0_i32_1 : i32, i32, i32
  }
  func.func @transform_2(%arg0: i32) -> (i32, i32) {
    %c0_i32 = arith.constant 0 : i32
    %c0_i32_0 = arith.constant 0 : i32
    %c0_i32_1 = arith.constant 0 : i32
    return %c0_i32, %c0_i32_0 : i32, i32
  }
  func.func @transform_3(%arg0: i32) -> (i32, i32, i32) {
    %c0_i32 = arith.constant 0 : i32
    %c0_i32_0 = arith.constant 0 : i32
    %c0_i32_1 = arith.constant 0 : i32
    %c0_i32_2 = arith.constant 0 : i32
    return %c0_i32, %c0_i32_0, %c0_i32_1 : i32, i32, i32
  }
  func.func @transform_4(%arg0: i32) -> (i32, i32) {
    %c0_i32 = arith.constant 0 : i32
    %c0_i32_0 = arith.constant 0 : i32
    %c0_i32_1 = arith.constant 0 : i32
    return %c0_i32, %c0_i32_0 : i32, i32
  }
  func.func @transform_5(%arg0: i32) -> (i32, i32, i32) {
    %c0_i32 = arith.constant 0 : i32
    %c0_i32_0 = arith.constant 0 : i32
    %c0_i32_1 = arith.constant 0 : i32
    return %arg0, %c0_i32, %c0_i32_0 : i32, i32, i32
  }
}

</mosaic_0001>

<llo_original>
// kernel: res2_forward.1
$region0: #{res2_forward.1}
  #allocation0 [shape = 'u32[]', space=smem, size = 0x4, offset = 0x4, fixed_abs, tag = 'smem constant byte address 0x4 - core index']
  #allocation1 [shape = 'u32[72,128]{1,0:T(1,128)}', space=vmem, size = 0x9000, scoped, tag = 'internal scratch']
  #allocation2 [shape = 'bf16[4,362]{1,0:T(4,128)(2,1)}', space=vmem, size = 0xc00, scoped, tag = 'scratch operand']
  #allocation3 [shape = 'bf16[16,362]{1,0:T(8,128)(2,1)}', space=vmem, size = 0x3000, scoped, tag = 'scratch operand']
  %s0 = inlined_call_operand.vmem [shape: bf16[2,4,324], index: 0, kind: input, shape index: {}]
  %s1 = inlined_call_operand.vmem [shape: bf16[9,16,4], index: 1, kind: input, shape index: {}]
  %s2 = inlined_call_operand.vmem [shape: f32[16,1], index: 2, kind: input, shape index: {}]
  %s3 = inlined_call_operand.vmem [shape: bf16[9,16,16], index: 3, kind: input, shape index: {}]
  %s4 = inlined_call_operand.vmem [shape: f32[16,1], index: 4, kind: input, shape index: {}]
  %s5 = inlined_call_operand.vmem [shape: f32[2,4,288], index: 5, kind: output, shape index: {}]
  %s6 = sld [smem:[#allocation0]]
  $region53: #{res2_forward.1} parent=0
    _
  %s8 = ssub.s32 1, %s6
  %s9 = scalar_select 0, %s8, %s6
  loop: start=0, step=1, limit=4
  $region2: #{res2_forward.1} parent=0 // loop_pre_header
    _
  $region3: #{res2_forward.1} parent=0 // loop_header
    %s11 = sphi 0, %s15
    %p12 = scmp.ge.s32.totalorder %s11, 4
    %s21 = sphi 0, %s23
    %s24 = sphi 0, %s21
    %s25 = sphi 0, %s24
    %s41 = sphi 0, %s25
    %s45 = sphi 0, %s45
    %s47 = sphi 0, %s45
    %s48 = sphi 0, %s47
    %s62 = sphi 0, %s48
    %s66 = sphi 0, %s66
    %s68 = sphi 0, %s66
    %s69 = sphi 0, %s68
    %s83 = sphi 0, %s69
    %s87 = sphi 0, %s87
    %s89 = sphi 0, %s87
    %s90 = sphi 0, %s89
    %s104 = sphi 0, %s90
    %s108 = sphi 0, %s108
    %s110 = sphi 0, %s108
    %s111 = sphi 0, %s110
    %s125 = sphi 0, %s111
    %s131 = sphi 0, %s133
    %s134 = sphi 0, %s131
    %s135 = sphi 0, %s134
    %s151 = sphi 0, %s135
  $region4: #{res2_forward.1} parent=0 // loop_header_branch
    %14 = sbr.rel (%p12) target = $region8
  $region5: #{res2_forward.1} parent=0 // loop_body
    %s16 = ssub.s32 %s11, 1
    %s17 = ssub.s32 %s11, 2
    %s18 = sadd.s32 %s11, 1
    %s19 = ssub.s32 %s11, %s18
    %p20 = scmp.eq.s32.totalorder %s19, 0
    %s22 = sadd.s32 %s21, 1
    %s23 = scalar_select %p20, %s21, %s22
    %p26 = pneg %p20
    %p27 = scmp.eq.s32.totalorder %s11, 1
    %p28 = por %p26, %p27
    %p29 = scmp.ne.s32.totalorder %s21, %s24
    %p30 = scmp.eq.s32.totalorder %s11, 0
    %p31 = por %p29, %p30
    %p32 = scmp.ne.s32.totalorder %s21, %s24
    %p33 = scmp.eq.s32.totalorder %s16, 1
    %p34 = por %p32, %p33
    %p35 = scmp.ne.s32.totalorder %s24, %s25
    %p36 = scmp.eq.s32.totalorder %s16, 0
    %p37 = por %p35, %p36
    %p38 = scmp.ne.s32.totalorder %s24, %s25
    %p39 = scmp.eq.s32.totalorder %s17, 1
    %p40 = por %p38, %p39
    %p42 = scmp.ne.s32.totalorder %s25, %s41
    %p43 = scmp.eq.s32.totalorder %s17, 0
    %p44 = por %p42, %p43
    %s46 = sadd.s32 %s45, 1
    %p49 = scmp.eq.s32.totalorder %s11, 1
    %p50 = scmp.ne.s32.totalorder %s45, %s47
    %p51 = scmp.eq.s32.totalorder %s11, 0
    %p52 = por %p50, %p51
    %p53 = scmp.ne.s32.totalorder %s45, %s47
    %p54 = scmp.eq.s32.totalorder %s16, 1
    %p55 = por %p53, %p54
    %p56 = scmp.ne.s32.totalorder %s47, %s48
    %p57 = scmp.eq.s32.totalorder %s16, 0
    %p58 = por %p56, %p57
    %p59 = scmp.ne.s32.totalorder %s47, %s48
    %p60 = scmp.eq.s32.totalorder %s17, 1
    %p61 = por %p59, %p60
    %p63 = scmp.ne.s32.totalorder %s48, %s62
    %p64 = scmp.eq.s32.totalorder %s17, 0
    %p65 = por %p63, %p64
    %s67 = sadd.s32 %s66, 1
    %p70 = scmp.eq.s32.totalorder %s11, 1
    %p71 = scmp.ne.s32.totalorder %s66, %s68
    %p72 = scmp.eq.s32.totalorder %s11, 0
    %p73 = por %p71, %p72
    %p74 = scmp.ne.s32.totalorder %s66, %s68
    %p75 = scmp.eq.s32.totalorder %s16, 1
    %p76 = por %p74, %p75
    %p77 = scmp.ne.s32.totalorder %s68, %s69
    %p78 = scmp.eq.s32.totalorder %s16, 0
    %p79 = por %p77, %p78
    %p80 = scmp.ne.s32.totalorder %s68, %s69
    %p81 = scmp.eq.s32.totalorder %s17, 1
    %p82 = por %p80, %p81
    %p84 = scmp.ne.s32.totalorder %s69, %s83
    %p85 = scmp.eq.s32.totalorder %s17, 0
    %p86 = por %p84, %p85
    %s88 = sadd.s32 %s87, 1
    %p91 = scmp.eq.s32.totalorder %s11, 1
    %p92 = scmp.ne.s32.totalorder %s87, %s89
    %p93 = scmp.eq.s32.totalorder %s11, 0
    %p94 = por %p92, %p93
    %p95 = scmp.ne.s32.totalorder %s87, %s89
    %p96 = scmp.eq.s32.totalorder %s16, 1
    %p97 = por %p95, %p96
    %p98 = scmp.ne.s32.totalorder %s89, %s90
    %p99 = scmp.eq.s32.totalorder %s16, 0
    %p100 = por %p98, %p99
    %p101 = scmp.ne.s32.totalorder %s89, %s90
    %p102 = scmp.eq.s32.totalorder %s17, 1
    %p103 = por %p101, %p102
    %p105 = scmp.ne.s32.totalorder %s90, %s104
    %p106 = scmp.eq.s32.totalorder %s17, 0
    %p107 = por %p105, %p106
    %s109 = sadd.s32 %s108, 1
    %p112 = scmp.eq.s32.totalorder %s11, 1
    %p113 = scmp.ne.s32.totalorder %s108, %s110
    %p114 = scmp.eq.s32.totalorder %s11, 0
    %p115 = por %p113, %p114
    %p116 = scmp.ne.s32.totalorder %s108, %s110
    %p117 = scmp.eq.s32.totalorder %s16, 1
    %p118 = por %p116, %p117
    %p119 = scmp.ne.s32.totalorder %s110, %s111
    %p120 = scmp.eq.s32.totalorder %s16, 0
    %p121 = por %p119, %p120
    %p122 = scmp.ne.s32.totalorder %s110, %s111
    %p123 = scmp.eq.s32.totalorder %s17, 1
    %p124 = por %p122, %p123
    %p126 = scmp.ne.s32.totalorder %s111, %s125
    %p127 = scmp.eq.s32.totalorder %s17, 0
    %p128 = por %p126, %p127
    %s129 = ssub.s32 %s11, %s18
    %p130 = scmp.eq.s32.totalorder %s129, 0
    %s132 = sadd.s32 %s131, 1
    %s133 = scalar_select %p130, %s131, %s132
    %p136 = pneg %p130
    %p137 = scmp.eq.s32.totalorder %s11, 1
    %p138 = por %p136, %p137
    %p139 = scmp.ne.s32.totalorder %s131, %s134
    %p140 = scmp.eq.s32.totalorder %s11, 0
    %p141 = por %p139, %p140
    %p142 = scmp.ne.s32.totalorder %s131, %s134
    %p143 = scmp.eq.s32.totalorder %s16, 1
    %p144 = por %p142, %p143
    %p145 = scmp.ne.s32.totalorder %s134, %s135
    %p146 = scmp.eq.s32.totalorder %s16, 0
    %p147 = por %p145, %p146
    %p148 = scmp.ne.s32.totalorder %s134, %s135
    %p149 = scmp.eq.s32.totalorder %s17, 1
    %p150 = por %p148, %p149
    %p152 = scmp.ne.s32.totalorder %s135, %s151
    %p153 = scmp.eq.s32.totalorder %s17, 0
    %p154 = por %p152, %p153
    %p155 = scmp.le.s32.totalorder 1, %s11
    %p156 = scmp.lt.s32.totalorder %s11, 3
    %p157 = pnand %p155, %p156
    %p158 = pneg %p157
    // Predicated region
    $region9: #{res2_forward.1} parent=5 // pred_check
      _
    $region10: #{res2_forward.1} parent=5 // pred_check_branch
      %160 = sbr.rel (%p157) target = $region12
    $region11: #{res2_forward.1} parent=5 // pred_region
      %s161 = ssub.s32 %s11, 1
      // Predicated region
      $region13: #{res2_forward.1} parent=11 // pred_check
        %p162 = pneg %p58
      $region14: #{res2_forward.1} parent=11 // pred_check_branch
        %164 = sbr.rel (%p162) target = $region16
      $region15: #{res2_forward.1} parent=11 // pred_region
        _
      $region16: #{res2_forward.1} parent=11 // pred_fallthru
        _
      // Predicated region
      $region17: #{res2_forward.1} parent=11 // pred_check
        %p165 = pneg %p79
      $region18: #{res2_forward.1} parent=11 // pred_check_branch
        %167 = sbr.rel (%p165) target = $region20
      $region19: #{res2_forward.1} parent=11 // pred_region
        _
      $region20: #{res2_forward.1} parent=11 // pred_fallthru
        _
      // Predicated region
      $region21: #{res2_forward.1} parent=11 // pred_check
        %p168 = pneg %p100
      $region22: #{res2_forward.1} parent=11 // pred_check_branch
        %170 = sbr.rel (%p168) target = $region24
      $region23: #{res2_forward.1} parent=11 // pred_region
        _
      $region24: #{res2_forward.1} parent=11 // pred_fallthru
        _
      // Predicated region
      $region25: #{res2_forward.1} parent=11 // pred_check
        %p171 = pneg %p121
      $region26: #{res2_forward.1} parent=11 // pred_check_branch
        %173 = sbr.rel (%p171) target = $region28
      $region27: #{res2_forward.1} parent=11 // pred_region
        _
      $region28: #{res2_forward.1} parent=11 // pred_fallthru
        _
    $region12: #{res2_forward.1} parent=5 // pred_fallthru
      _
    %p174 = scmp.lt.s32.totalorder %s11, 2
    // Predicated region
    $region29: #{res2_forward.1} parent=5 // pred_check
      %p175 = pneg %p174
    $region30: #{res2_forward.1} parent=5 // pred_check_branch
      %177 = sbr.rel (%p175) target = $region32
    $region31: #{res2_forward.1} parent=5 // pred_region
      // Predicated region
      $region33: #{res2_forward.1} parent=31 // pred_check
        %p178 = pneg %p31
      $region34: #{res2_forward.1} parent=31 // pred_check_branch
        %180 = sbr.rel (%p178) target = $region36
      $region35: #{res2_forward.1} parent=31 // pred_region
        %p181 = scmp.lt.s32.totalorder %s11, 1
        %s182 = scalar_select %p181, %s11, 1
        %s183 = smul.addr %s182, 3
        %s184 = smul.addr %s183, 2
        %s185 = scalar_lea.vmem %s0, %s184
      $region36: #{res2_forward.1} parent=31 // pred_fallthru
        _
    $region32: #{res2_forward.1} parent=5 // pred_fallthru
      _
    %p186 = scmp.le.s32.totalorder 1, %s11
    %p187 = scmp.lt.s32.totalorder %s11, 3
    %p188 = pnand %p186, %p187
    %p189 = pneg %p188
    // Predicated region
    $region37: #{res2_forward.1} parent=5 // pred_check
      _
    $region38: #{res2_forward.1} parent=5 // pred_check_branch
      %191 = sbr.rel (%p188) target = $region40
    $region39: #{res2_forward.1} parent=5 // pred_region
      %s192 = ssub.s32 %s11, 1
      %p193 = scmp.lt.s32.totalorder %s16, 1
      %s194 = scalar_select %p193, %s16, 1
      %s195 = smul.addr %s194, 3
      %s196 = smul.addr %s195, 2
      %s197 = scalar_lea.vmem %s0, %s196
      %p198 = pneg %p37
      %p199 = pneg %p34
      %p200 = pneg %p58
      %p201 = pneg %p55
      %p202 = pneg %p79
      %p203 = pneg %p76
      %p204 = pneg %p100
      %p205 = pneg %p97
      %p206 = pneg %p121
      %p207 = pneg %p118
      %p208 = pneg %p147
      %p209 = pneg %p144
      %p210 = scmp.lt.s32.totalorder %s16, 1
      %s211 = scalar_select %p210, %s16, 1
      %s212 = smul.addr %s211, 3
      %s213 = smul.addr %s212, 4
      %s214 = scalar_lea.vmem %s5, %s213
      %p215 = scmp.lt.s32.totalorder %s16, 1
      %s216 = scalar_select %p215, %s16, 1
      %s217 = smul.addr %s216, 3
      %s218 = smul.addr %s217, 2
      %s219 = scalar_lea.vmem %s0, %s218
      %p220 = scmp.lt.s32.totalorder %s16, 1
      %s221 = scalar_select %p220, %s16, 1
      %s222 = smul.addr %s221, 3
      %s223 = smul.addr %s222, 4
      %s224 = scalar_lea.vmem %s5, %s223
      %v226 = vld [vmem:[%s219] sm:$0x3f]
      %vm227 = vcmask 1041408
      %vm228 = vcmask 1043458
      %vm229 = vmor %vm228, %vm227
      %vm230 = vcmask 553988
      %vm231 = vmor %vm230, %vm229
      %232 = vst.msk [vmem:[#allocation2] sm:$0x3f] %vm231, %v226
      %vm233 = vcmask 861728
      %234 = vst.msk [vmem:[#allocation2 + $0x4] sm:$0x3] %vm233, 0
      %vm235 = vcmask 863776
      %236 = vst.msk [vmem:[#allocation3 + $0x8] sm:$0xf] %vm235, 0
      %237 = vst.msk [vmem:[#allocation3 + $0x14] sm:$0xf] %vm235, 0
      %vm238 = vcmask 150528
      %239 = vst.msk [vmem:[#allocation3] sm:$0xf] %vm238, 0
      %240 = vst.msk [vmem:[#allocation3 + $0xc] sm:$0xf] %vm238, 0
      %vm241 = vcmask 552336
      %242 = vst.msk [vmem:[#allocation3 + $0x8] sm:$0xf] %vm241, 0
      %243 = vst.msk [vmem:[#allocation3 + $0x14] sm:$0xf] %vm241, 0
      %v244 = vld [vmem:[%s1] sm:$0xf]
      %v245 = vld [vmem:[%s1 + $0x4] sm:$0xf]
      %v246 = vld [vmem:[#allocation2] sm:$0x3f]
      %s247 = scalar_lea.vmem %s1, 8
      %v248 = vld [vmem:[%s247] sm:$0xf]
      %v249 = vld [vmem:[%s247 + $0x4] sm:$0xf]
      %v252 = vunpack.c.l.b16 %v248
      %v253 = vunpack.c.l.b16 %v249
      %v254 = vpack.c.b16 %v253, %v252
      %256 = vst [vmem:[#allocation1] ss:$4 sm:$0xff] %v246
      %v257 = vld.sshfl [vmem:[#allocation1] sm:$0xff pattern:$0x73625140]
      %v259 = vld.sshfl [vmem:[#allocation1 + $0x8] sm:$0xff pattern:$0x73625140]
      %v261 = vld.sshfl [vmem:[#allocation1 + $0x10] sm:$0xff pattern:$0x73625140]
      %263 = vrot.lane.b32.xlu0 %v257, 127
      %v264 = vpop.permute.xlu0 %263
      %265 = vrot.lane.b32.xlu0 %v259, 127
      %v266 = vpop.permute.xlu0 %265
      %267 = vrot.lane.b32.xlu0 %v261, 127
      %v268 = vpop.permute.xlu0 %267
      %vm269 = vcmask 1039360
      %v270 = vsel %vm269, %v264, %v266
      %v271 = vsel %vm269, %v266, %v268
      %vm272 = vcmask 31744
      %v274 = vsel %vm272, %v254, 0
      %v277 = vsel %vm227, %v270, 0
      %v280 = vsel %vm227, %v271, 0
      %v283 = vsel %vm227, %v268, 0
      %285 = vmatpush.bf16.msra.mxu0 0
      %286 = vmatpush.bf16.msra.mxu0 0
      %287 = vmatpush.bf16.msra.mxu0 0
      %288 = vmatpush.bf16.msra.mxu0 0
      %289 = vmatpush.bf16.msra.mxu0 0
      %290 = vmatpush.bf16.msra.mxu0 0
      %291 = vmatpush.bf16.msra.mxu0 0
      %292 = vmatpush.bf16.msra.mxu0 %v277
      %293 = vmatmul.bf16.gmra.mxu0 %v274
      %v294 = vpop.f32.mrf.mxu0
      %v295 = vadd.f32 0.0, %v294
      %v296 = vpop.f32.mrf.mxu0
      %v297 = vadd.f32 0.0, %v296
      %298 = vdwg.mxu0
      %299 = vmatpush.bf16.msra.mxu0 0
      %300 = vmatpush.bf16.msra.mxu0 0
      %301 = vmatpush.bf16.msra.mxu0 0
      %302 = vmatpush.bf16.msra.mxu0 0
      %303 = vmatpush.bf16.msra.mxu0 0
      %304 = vmatpush.bf16.msra.mxu0 0
      %305 = vmatpush.bf16.msra.mxu0 0
      %306 = vmatpush.bf16.msra.mxu0 %v280
      %307 = vmatmul.bf16.gmra.mxu0 %v274
      %v308 = vpop.f32.mrf.mxu0
      %v309 = vadd.f32 0.0, %v308
      %v310 = vpop.f32.mrf.mxu0
      %v311 = vadd.f32 0.0, %v310
      %312 = vdwg.mxu0
      %313 = vmatpush.bf16.msra.mxu0 0
      %314 = vmatpush.bf16.msra.mxu0 0
      %315 = vmatpush.bf16.msra.mxu0 0
      %316 = vmatpush.bf16.msra.mxu0 0
      %317 = vmatpush.bf16.msra.mxu0 0
      %318 = vmatpush.bf16.msra.mxu0 0
      %319 = vmatpush.bf16.msra.mxu0 0
      %320 = vmatpush.bf16.msra.mxu0 %v283
      %321 = vmatmul.bf16.gmra.mxu0 %v274
      %v322 = vpop.f32.mrf.mxu0
      %v323 = vadd.f32 0.0, %v322
      %v324 = vpop.f32.mrf.mxu0
      %v325 = vadd.f32 0.0, %v324
      %326 = vdwg.mxu0
      %v329 = vunpack.c.l.b16 %v244
      %v330 = vunpack.c.l.b16 %v245
      %v331 = vpack.c.b16 %v330, %v329
      %332 = vst [vmem:[#allocation1] ss:$4 sm:$0xff] %v246
      %v333 = vld.sshfl [vmem:[#allocation1] sm:$0xff pattern:$0x73625140]
      %v334 = vld.sshfl [vmem:[#allocation1 + $0x8] sm:$0xff pattern:$0x73625140]
      %v335 = vld.sshfl [vmem:[#allocation1 + $0x10] sm:$0xff pattern:$0x73625140]
      %v337 = vsel %vm272, %v331, 0
      %v339 = vsel %vm227, %v333, 0
      %v341 = vsel %vm227, %v334, 0
      %v343 = vsel %vm227, %v335, 0
      %345 = vmatpush.bf16.msra.mxu0 0
      %346 = vmatpush.bf16.msra.mxu0 0
      %347 = vmatpush.bf16.msra.mxu0 0
      %348 = vmatpush.bf16.msra.mxu0 0
      %349 = vmatpush.bf16.msra.mxu0 0
      %350 = vmatpush.bf16.msra.mxu0 0
      %351 = vmatpush.bf16.msra.mxu0 0
      %352 = vmatpush.bf16.msra.mxu0 %v339
      %353 = vmatmul.bf16.gmra.mxu0 %v337
      %v354 = vpop.f32.mrf.mxu0
      %v355 = vadd.f32 %v295, %v354
      %v356 = vpop.f32.mrf.mxu0
      %v357 = vadd.f32 %v297, %v356
      %358 = vdwg.mxu0
      %359 = vmatpush.bf16.msra.mxu0 0
      %360 = vmatpush.bf16.msra.mxu0 0
      %361 = vmatpush.bf16.msra.mxu0 0
      %362 = vmatpush.bf16.msra.mxu0 0
      %363 = vmatpush.bf16.msra.mxu0 0
      %364 = vmatpush.bf16.msra.mxu0 0
      %365 = vmatpush.bf16.msra.mxu0 0
      %366 = vmatpush.bf16.msra.mxu0 %v341
      %367 = vmatmul.bf16.gmra.mxu0 %v337
      %v368 = vpop.f32.mrf.mxu0
      %v369 = vadd.f32 %v309, %v368
      %v370 = vpop.f32.mrf.mxu0
      %v371 = vadd.f32 %v311, %v370
      %372 = vdwg.mxu0
      %373 = vmatpush.bf16.msra.mxu0 0
      %374 = vmatpush.bf16.msra.mxu0 0
      %375 = vmatpush.bf16.msra.mxu0 0
      %376 = vmatpush.bf16.msra.mxu0 0
      %377 = vmatpush.bf16.msra.mxu0 0
      %378 = vmatpush.bf16.msra.mxu0 0
      %379 = vmatpush.bf16.msra.mxu0 0
      %380 = vmatpush.bf16.msra.mxu0 %v343
      %381 = vmatmul.bf16.gmra.mxu0 %v337
      %v382 = vpop.f32.mrf.mxu0
      %v383 = vadd.f32 %v323, %v382
      %v384 = vpop.f32.mrf.mxu0
      %v385 = vadd.f32 %v325, %v384
      %386 = vdwg.mxu0
      %s387 = scalar_lea.vmem %s1, 16
      %v388 = vld [vmem:[%s387] sm:$0xf]
      %v389 = vld [vmem:[%s387 + $0x4] sm:$0xf]
      %v390 = vld [vmem:[#allocation2] sm:$0x3f]
      %v393 = vunpack.c.l.b16 %v388
      %v394 = vunpack.c.l.b16 %v389
      %v395 = vpack.c.b16 %v394, %v393
      %397 = vst [vmem:[#allocation1] ss:$4 sm:$0xff] %v390
      %v398 = vld.sshfl [vmem:[#allocation1] sm:$0xff pattern:$0x73625140]
      %v400 = vld.sshfl [vmem:[#allocation1 + $0x8] sm:$0xff pattern:$0x73625140]
      %v402 = vld.sshfl [vmem:[#allocation1 + $0x10] sm:$0xff pattern:$0x73625140]
      %404 = vrot.lane.b32.xlu0 %v398, 126
      %v405 = vpop.permute.xlu0 %404
      %406 = vrot.lane.b32.xlu0 %v400, 126
      %v407 = vpop.permute.xlu0 %406
      %408 = vrot.lane.b32.xlu0 %v402, 126
      %v409 = vpop.permute.xlu0 %408
      %vm410 = vcmask 1031168
      %v411 = vsel %vm410, %v405, %v407
      %v412 = vsel %vm410, %v407, %v409
      %v414 = vsel %vm272, %v395, 0
      %v417 = vsel %vm227, %v411, 0
      %v420 = vsel %vm227, %v412, 0
      %v423 = vsel %vm227, %v409, 0
      %425 = vmatpush.bf16.msra.mxu0 0
      %426 = vmatpush.bf16.msra.mxu0 0
      %427 = vmatpush.bf16.msra.mxu0 0
      %428 = vmatpush.bf16.msra.mxu0 0
      %429 = vmatpush.bf16.msra.mxu0 0
      %430 = vmatpush.bf16.msra.mxu0 0
      %431 = vmatpush.bf16.msra.mxu0 0
      %432 = vmatpush.bf16.msra.mxu0 %v417
      %433 = vmatmul.bf16.gmra.mxu0 %v414
      %v434 = vpop.f32.mrf.mxu0
      %v435 = vadd.f32 0.0, %v434
      %v436 = vpop.f32.mrf.mxu0
      %v437 = vadd.f32 0.0, %v436
      %438 = vdwg.mxu0
      %439 = vmatpush.bf16.msra.mxu0 0
      %440 = vmatpush.bf16.msra.mxu0 0
      %441 = vmatpush.bf16.msra.mxu0 0
      %442 = vmatpush.bf16.msra.mxu0 0
      %443 = vmatpush.bf16.msra.mxu0 0
      %444 = vmatpush.bf16.msra.mxu0 0
      %445 = vmatpush.bf16.msra.mxu0 0
      %446 = vmatpush.bf16.msra.mxu0 %v420
      %447 = vmatmul.bf16.gmra.mxu0 %v414
      %v448 = vpop.f32.mrf.mxu0
      %v449 = vadd.f32 0.0, %v448
      %v450 = vpop.f32.mrf.mxu0
      %v451 = vadd.f32 0.0, %v450
      %452 = vdwg.mxu0
      %453 = vmatpush.bf16.msra.mxu0 0
      %454 = vmatpush.bf16.msra.mxu0 0
      %455 = vmatpush.bf16.msra.mxu0 0
      %456 = vmatpush.bf16.msra.mxu0 0
      %457 = vmatpush.bf16.msra.mxu0 0
      %458 = vmatpush.bf16.msra.mxu0 0
      %459 = vmatpush.bf16.msra.mxu0 0
      %460 = vmatpush.bf16.msra.mxu0 %v423
      %461 = vmatmul.bf16.gmra.mxu0 %v414
      %v462 = vpop.f32.mrf.mxu0
      %v463 = vadd.f32 0.0, %v462
      %v464 = vpop.f32.mrf.mxu0
      %v465 = vadd.f32 0.0, %v464
      %466 = vdwg.mxu0
      %v467 = vadd.f32 %v355, %v435
      %v468 = vadd.f32 %v369, %v449
      %v469 = vadd.f32 %v383, %v463
      %v470 = vadd.f32 %v357, %v437
      %v471 = vadd.f32 %v371, %v451
      %v472 = vadd.f32 %v385, %v465
      %s473 = scalar_lea.vmem %s1, 24
      %v474 = vld [vmem:[%s473] sm:$0xf]
      %v475 = vld [vmem:[%s473 + $0x4] sm:$0xf]
      %v476 = vld [vmem:[#allocation2] sm:$0x3f]
      %v479 = vunpack.c.l.b16 %v474
      %v480 = vunpack.c.l.b16 %v475
      %v481 = vpack.c.b16 %v480, %v479
      %483 = vst [vmem:[#allocation1] ss:$4 sm:$0xff] %v476
      %v484 = vld.sshfl [vmem:[#allocation1] sm:$0xff pattern:$0x73625140]
      %v486 = vld.sshfl [vmem:[#allocation1 + $0x8] sm:$0xff pattern:$0x73625140]
      %v488 = vld.sshfl [vmem:[#allocation1 + $0x10] sm:$0xff pattern:$0x73625140]
      %490 = vrot.lane.b32.xlu0 %v484, 110
      %v491 = vpop.permute.xlu0 %490
      %492 = vrot.lane.b32.xlu0 %v486, 110
      %v493 = vpop.permute.xlu0 %492
      %494 = vrot.lane.b32.xlu0 %v488, 110
      %v495 = vpop.permute.xlu0 %494
      %vm496 = vcmask 900096
      %v497 = vsel %vm496, %v491, %v493
      %v498 = vsel %vm496, %v493, %v495
      %v500 = vsel %vm272, %v481, 0
      %v503 = vsel %vm227, %v497, 0
      %v506 = vsel %vm227, %v498, 0
      %v509 = vsel %vm227, %v495, 0
      %511 = vmatpush.bf16.msra.mxu0 0
      %512 = vmatpush.bf16.msra.mxu0 0
      %513 = vmatpush.bf16.msra.mxu0 0
      %514 = vmatpush.bf16.msra.mxu0 0
      %515 = vmatpush.bf16.msra.mxu0 0
      %516 = vmatpush.bf16.msra.mxu0 0
      %517 = vmatpush.bf16.msra.mxu0 0
      %518 = vmatpush.bf16.msra.mxu0 %v503
      %519 = vmatmul.bf16.gmra.mxu0 %v500
      %v520 = vpop.f32.mrf.mxu0
      %v521 = vadd.f32 0.0, %v520
      %v522 = vpop.f32.mrf.mxu0
      %v523 = vadd.f32 0.0, %v522
      %524 = vdwg.mxu0
      %525 = vmatpush.bf16.msra.mxu0 0
      %526 = vmatpush.bf16.msra.mxu0 0
      %527 = vmatpush.bf16.msra.mxu0 0
      %528 = vmatpush.bf16.msra.mxu0 0
      %529 = vmatpush.bf16.msra.mxu0 0
      %530 = vmatpush.bf16.msra.mxu0 0
      %531 = vmatpush.bf16.msra.mxu0 0
      %532 = vmatpush.bf16.msra.mxu0 %v506
      %533 = vmatmul.bf16.gmra.mxu0 %v500
      %v534 = vpop.f32.mrf.mxu0
      %v535 = vadd.f32 0.0, %v534
      %v536 = vpop.f32.mrf.mxu0
      %v537 = vadd.f32 0.0, %v536
      %538 = vdwg.mxu0
      %539 = vmatpush.bf16.msra.mxu0 0
      %540 = vmatpush.bf16.msra.mxu0 0
      %541 = vmatpush.bf16.msra.mxu0 0
      %542 = vmatpush.bf16.msra.mxu0 0
      %543 = vmatpush.bf16.msra.mxu0 0
      %544 = vmatpush.bf16.msra.mxu0 0
      %545 = vmatpush.bf16.msra.mxu0 0
      %546 = vmatpush.bf16.msra.mxu0 %v509
      %547 = vmatmul.bf16.gmra.mxu0 %v500
      %v548 = vpop.f32.mrf.mxu0
      %v549 = vadd.f32 0.0, %v548
      %v550 = vpop.f32.mrf.mxu0
      %v551 = vadd.f32 0.0, %v550
      %552 = vdwg.mxu0
      %v553 = vadd.f32 %v467, %v521
      %v554 = vadd.f32 %v468, %v535
      %v555 = vadd.f32 %v469, %v549
      %v556 = vadd.f32 %v470, %v523
      %v557 = vadd.f32 %v471, %v537
      %v558 = vadd.f32 %v472, %v551
      %s559 = scalar_lea.vmem %s1, 32
      %v560 = vld [vmem:[%s559] sm:$0xf]
      %v561 = vld [vmem:[%s559 + $0x4] sm:$0xf]
      %v562 = vld [vmem:[#allocation2] sm:$0x3f]
      %v565 = vunpack.c.l.b16 %v560
      %v566 = vunpack.c.l.b16 %v561
      %v567 = vpack.c.b16 %v566, %v565
      %569 = vst [vmem:[#allocation1] ss:$4 sm:$0xff] %v562
      %v570 = vld.sshfl [vmem:[#allocation1] sm:$0xff pattern:$0x73625140]
      %v572 = vld.sshfl [vmem:[#allocation1 + $0x8] sm:$0xff pattern:$0x73625140]
      %v574 = vld.sshfl [vmem:[#allocation1 + $0x10] sm:$0xff pattern:$0x73625140]
      %576 = vrot.lane.b32.xlu0 %v570, 109
      %v577 = vpop.permute.xlu0 %576
      %578 = vrot.lane.b32.xlu0 %v572, 109
      %v579 = vpop.permute.xlu0 %578
      %580 = vrot.lane.b32.xlu0 %v574, 109
      %v581 = vpop.permute.xlu0 %580
      %vm582 = vcmask 891904
      %v583 = vsel %vm582, %v577, %v579
      %v584 = vsel %vm582, %v579, %v581
      %v586 = vsel %vm272, %v567, 0
      %v589 = vsel %vm227, %v583, 0
      %v592 = vsel %vm227, %v584, 0
      %v595 = vsel %vm227, %v581, 0
      %597 = vmatpush.bf16.msra.mxu0 0
      %598 = vmatpush.bf16.msra.mxu0 0
      %599 = vmatpush.bf16.msra.mxu0 0
      %600 = vmatpush.bf16.msra.mxu0 0
      %601 = vmatpush.bf16.msra.mxu0 0
      %602 = vmatpush.bf16.msra.mxu0 0
      %603 = vmatpush.bf16.msra.mxu0 0
      %604 = vmatpush.bf16.msra.mxu0 %v589
      %605 = vmatmul.bf16.gmra.mxu0 %v586
      %v606 = vpop.f32.mrf.mxu0
      %v607 = vadd.f32 0.0, %v606
      %v608 = vpop.f32.mrf.mxu0
      %v609 = vadd.f32 0.0, %v608
      %610 = vdwg.mxu0
      %611 = vmatpush.bf16.msra.mxu0 0
      %612 = vmatpush.bf16.msra.mxu0 0
      %613 = vmatpush.bf16.msra.mxu0 0
      %614 = vmatpush.bf16.msra.mxu0 0
      %615 = vmatpush.bf16.msra.mxu0 0
      %616 = vmatpush.bf16.msra.mxu0 0
      %617 = vmatpush.bf16.msra.mxu0 0
      %618 = vmatpush.bf16.msra.mxu0 %v592
      %619 = vmatmul.bf16.gmra.mxu0 %v586
      %v620 = vpop.f32.mrf.mxu0
      %v621 = vadd.f32 0.0, %v620
      %v622 = vpop.f32.mrf.mxu0
      %v623 = vadd.f32 0.0, %v622
      %624 = vdwg.mxu0
      %625 = vmatpush.bf16.msra.mxu0 0
      %626 = vmatpush.bf16.msra.mxu0 0
      %627 = vmatpush.bf16.msra.mxu0 0
      %628 = vmatpush.bf16.msra.mxu0 0
      %629 = vmatpush.bf16.msra.mxu0 0
      %630 = vmatpush.bf16.msra.mxu0 0
      %631 = vmatpush.bf16.msra.mxu0 0
      %632 = vmatpush.bf16.msra.mxu0 %v595
      %633 = vmatmul.bf16.gmra.mxu0 %v586
      %v634 = vpop.f32.mrf.mxu0
      %v635 = vadd.f32 0.0, %v634
      %v636 = vpop.f32.mrf.mxu0
      %v637 = vadd.f32 0.0, %v636
      %638 = vdwg.mxu0
      %v639 = vadd.f32 %v553, %v607
      %v640 = vadd.f32 %v554, %v621
      %v641 = vadd.f32 %v555, %v635
      %v642 = vadd.f32 %v556, %v609
      %v643 = vadd.f32 %v557, %v623
      %v644 = vadd.f32 %v558, %v637
      %s645 = scalar_lea.vmem %s1, 40
      %v646 = vld [vmem:[%s645] sm:$0xf]
      %v647 = vld [vmem:[%s645 + $0x4] sm:$0xf]
      %v648 = vld [vmem:[#allocation2] sm:$0x3f]
      %v651 = vunpack.c.l.b16 %v646
      %v652 = vunpack.c.l.b16 %v647
      %v653 = vpack.c.b16 %v652, %v651
      %655 = vst [vmem:[#allocation1] ss:$4 sm:$0xff] %v648
      %v656 = vld.sshfl [vmem:[#allocation1] sm:$0xff pattern:$0x73625140]
      %v658 = vld.sshfl [vmem:[#allocation1 + $0x8] sm:$0xff pattern:$0x73625140]
      %v660 = vld.sshfl [vmem:[#allocation1 + $0x10] sm:$0xff pattern:$0x73625140]
      %662 = vrot.lane.b32.xlu0 %v656, 108
      %v663 = vpop.permute.xlu0 %662
      %664 = vrot.lane.b32.xlu0 %v658, 108
      %v665 = vpop.permute.xlu0 %664
      %666 = vrot.lane.b32.xlu0 %v660, 108
      %v667 = vpop.permute.xlu0 %666
      %vm668 = vcmask 883712
      %v669 = vsel %vm668, %v663, %v665
      %v670 = vsel %vm668, %v665, %v667
      %v672 = vsel %vm272, %v653, 0
      %v675 = vsel %vm227, %v669, 0
      %v678 = vsel %vm227, %v670, 0
      %v681 = vsel %vm227, %v667, 0
      %683 = vmatpush.bf16.msra.mxu0 0
      %684 = vmatpush.bf16.msra.mxu0 0
      %685 = vmatpush.bf16.msra.mxu0 0
      %686 = vmatpush.bf16.msra.mxu0 0
      %687 = vmatpush.bf16.msra.mxu0 0
      %688 = vmatpush.bf16.msra.mxu0 0
      %689 = vmatpush.bf16.msra.mxu0 0
      %690 = vmatpush.bf16.msra.mxu0 %v675
      %691 = vmatmul.bf16.gmra.mxu0 %v672
      %v692 = vpop.f32.mrf.mxu0
      %v693 = vadd.f32 0.0, %v692
      %v694 = vpop.f32.mrf.mxu0
      %v695 = vadd.f32 0.0, %v694
      %696 = vdwg.mxu0
      %697 = vmatpush.bf16.msra.mxu0 0
      %698 = vmatpush.bf16.msra.mxu0 0
      %699 = vmatpush.bf16.msra.mxu0 0
      %700 = vmatpush.bf16.msra.mxu0 0
      %701 = vmatpush.bf16.msra.mxu0 0
      %702 = vmatpush.bf16.msra.mxu0 0
      %703 = vmatpush.bf16.msra.mxu0 0
      %704 = vmatpush.bf16.msra.mxu0 %v678
      %705 = vmatmul.bf16.gmra.mxu0 %v672
      %v706 = vpop.f32.mrf.mxu0
      %v707 = vadd.f32 0.0, %v706
      %v708 = vpop.f32.mrf.mxu0
      %v709 = vadd.f32 0.0, %v708
      %710 = vdwg.mxu0
      %711 = vmatpush.bf16.msra.mxu0 0
      %712 = vmatpush.bf16.msra.mxu0 0
      %713 = vmatpush.bf16.msra.mxu0 0
      %714 = vmatpush.bf16.msra.mxu0 0
      %715 = vmatpush.bf16.msra.mxu0 0
      %716 = vmatpush.bf16.msra.mxu0 0
      %717 = vmatpush.bf16.msra.mxu0 0
      %718 = vmatpush.bf16.msra.mxu0 %v681
      %719 = vmatmul.bf16.gmra.mxu0 %v672
      %v720 = vpop.f32.mrf.mxu0
      %v721 = vadd.f32 0.0, %v720
      %v722 = vpop.f32.mrf.mxu0
      %v723 = vadd.f32 0.0, %v722
      %724 = vdwg.mxu0
      %v725 = vadd.f32 %v639, %v693
      %v726 = vadd.f32 %v640, %v707
      %v727 = vadd.f32 %v641, %v721
      %v728 = vadd.f32 %v642, %v695
      %v729 = vadd.f32 %v643, %v709
      %v730 = vadd.f32 %v644, %v723
      %s731 = scalar_lea.vmem %s1, 48
      %v732 = vld [vmem:[%s731] sm:$0xf]
      %v733 = vld [vmem:[%s731 + $0x4] sm:$0xf]
      %v734 = vld [vmem:[#allocation2] sm:$0x3f]
      %v737 = vunpack.c.l.b16 %v732
      %v738 = vunpack.c.l.b16 %v733
      %v739 = vpack.c.b16 %v738, %v737
      %741 = vst [vmem:[#allocation1] ss:$4 sm:$0xff] %v734
      %v742 = vld.sshfl [vmem:[#allocation1] sm:$0xff pattern:$0x73625140]
      %v744 = vld.sshfl [vmem:[#allocation1 + $0x8] sm:$0xff pattern:$0x73625140]
      %v746 = vld.sshfl [vmem:[#allocation1 + $0x10] sm:$0xff pattern:$0x73625140]
      %748 = vrot.lane.b32.xlu0 %v742, 92
      %v749 = vpop.permute.xlu0 %748
      %750 = vrot.lane.b32.xlu0 %v744, 92
      %v751 = vpop.permute.xlu0 %750
      %752 = vrot.lane.b32.xlu0 %v746, 92
      %v753 = vpop.permute.xlu0 %752
      %vm754 = vcmask 752640
      %v755 = vsel %vm754, %v749, %v751
      %v756 = vsel %vm754, %v751, %v753
      %v758 = vsel %vm272, %v739, 0
      %v761 = vsel %vm227, %v755, 0
      %v764 = vsel %vm227, %v756, 0
      %v767 = vsel %vm227, %v753, 0
      %769 = vmatpush.bf16.msra.mxu0 0
      %770 = vmatpush.bf16.msra.mxu0 0
      %771 = vmatpush.bf16.msra.mxu0 0
      %772 = vmatpush.bf16.msra.mxu0 0
      %773 = vmatpush.bf16.msra.mxu0 0
      %774 = vmatpush.bf16.msra.mxu0 0
      %775 = vmatpush.bf16.msra.mxu0 0
      %776 = vmatpush.bf16.msra.mxu0 %v761
      %777 = vmatmul.bf16.gmra.mxu0 %v758
      %v778 = vpop.f32.mrf.mxu0
      %v779 = vadd.f32 0.0, %v778
      %v780 = vpop.f32.mrf.mxu0
      %v781 = vadd.f32 0.0, %v780
      %782 = vdwg.mxu0
      %783 = vmatpush.bf16.msra.mxu0 0
      %784 = vmatpush.bf16.msra.mxu0 0
      %785 = vmatpush.bf16.msra.mxu0 0
      %786 = vmatpush.bf16.msra.mxu0 0
      %787 = vmatpush.bf16.msra.mxu0 0
      %788 = vmatpush.bf16.msra.mxu0 0
      %789 = vmatpush.bf16.msra.mxu0 0
      %790 = vmatpush.bf16.msra.mxu0 %v764
      %791 = vmatmul.bf16.gmra.mxu0 %v758
      %v792 = vpop.f32.mrf.mxu0
      %v793 = vadd.f32 0.0, %v792
      %v794 = vpop.f32.mrf.mxu0
      %v795 = vadd.f32 0.0, %v794
      %796 = vdwg.mxu0
      %797 = vmatpush.bf16.msra.mxu0 0
      %798 = vmatpush.bf16.msra.mxu0 0
      %799 = vmatpush.bf16.msra.mxu0 0
      %800 = vmatpush.bf16.msra.mxu0 0
      %801 = vmatpush.bf16.msra.mxu0 0
      %802 = vmatpush.bf16.msra.mxu0 0
      %803 = vmatpush.bf16.msra.mxu0 0
      %804 = vmatpush.bf16.msra.mxu0 %v767
      %805 = vmatmul.bf16.gmra.mxu0 %v758
      %v806 = vpop.f32.mrf.mxu0
      %v807 = vadd.f32 0.0, %v806
      %v808 = vpop.f32.mrf.mxu0
      %v809 = vadd.f32 0.0, %v808
      %810 = vdwg.mxu0
      %v811 = vadd.f32 %v725, %v779
      %v812 = vadd.f32 %v726, %v793
      %v813 = vadd.f32 %v727, %v807
      %v814 = vadd.f32 %v728, %v781
      %v815 = vadd.f32 %v729, %v795
      %v816 = vadd.f32 %v730, %v809
      %s817 = scalar_lea.vmem %s1, 56
      %v818 = vld [vmem:[%s817] sm:$0xf]
      %v819 = vld [vmem:[%s817 + $0x4] sm:$0xf]
      %v820 = vld [vmem:[#allocation2] sm:$0x3f]
      %v823 = vunpack.c.l.b16 %v818
      %v824 = vunpack.c.l.b16 %v819
      %v825 = vpack.c.b16 %v824, %v823
      %827 = vst [vmem:[#allocation1] ss:$4 sm:$0xff] %v820
      %v828 = vld.sshfl [vmem:[#allocation1] sm:$0xff pattern:$0x73625140]
      %v830 = vld.sshfl [vmem:[#allocation1 + $0x8] sm:$0xff pattern:$0x73625140]
      %v832 = vld.sshfl [vmem:[#allocation1 + $0x10] sm:$0xff pattern:$0x73625140]
      %834 = vrot.lane.b32.xlu0 %v828, 91
      %v835 = vpop.permute.xlu0 %834
      %836 = vrot.lane.b32.xlu0 %v830, 91
      %v837 = vpop.permute.xlu0 %836
      %838 = vrot.lane.b32.xlu0 %v832, 91
      %v839 = vpop.permute.xlu0 %838
      %vm840 = vcmask 744448
      %v841 = vsel %vm840, %v835, %v837
      %v842 = vsel %vm840, %v837, %v839
      %v844 = vsel %vm272, %v825, 0
      %v847 = vsel %vm227, %v841, 0
      %v850 = vsel %vm227, %v842, 0
      %v853 = vsel %vm227, %v839, 0
      %855 = vmatpush.bf16.msra.mxu0 0
      %856 = vmatpush.bf16.msra.mxu0 0
      %857 = vmatpush.bf16.msra.mxu0 0
      %858 = vmatpush.bf16.msra.mxu0 0
      %859 = vmatpush.bf16.msra.mxu0 0
      %860 = vmatpush.bf16.msra.mxu0 0
      %861 = vmatpush.bf16.msra.mxu0 0
      %862 = vmatpush.bf16.msra.mxu0 %v847
      %863 = vmatmul.bf16.gmra.mxu0 %v844
      %v864 = vpop.f32.mrf.mxu0
      %v865 = vadd.f32 0.0, %v864
      %v866 = vpop.f32.mrf.mxu0
      %v867 = vadd.f32 0.0, %v866
      %868 = vdwg.mxu0
      %869 = vmatpush.bf16.msra.mxu0 0
      %870 = vmatpush.bf16.msra.mxu0 0
      %871 = vmatpush.bf16.msra.mxu0 0
      %872 = vmatpush.bf16.msra.mxu0 0
      %873 = vmatpush.bf16.msra.mxu0 0
      %874 = vmatpush.bf16.msra.mxu0 0
      %875 = vmatpush.bf16.msra.mxu0 0
      %876 = vmatpush.bf16.msra.mxu0 %v850
      %877 = vmatmul.bf16.gmra.mxu0 %v844
      %v878 = vpop.f32.mrf.mxu0
      %v879 = vadd.f32 0.0, %v878
      %v880 = vpop.f32.mrf.mxu0
      %v881 = vadd.f32 0.0, %v880
      %882 = vdwg.mxu0
      %883 = vmatpush.bf16.msra.mxu0 0
      %884 = vmatpush.bf16.msra.mxu0 0
      %885 = vmatpush.bf16.msra.mxu0 0
      %886 = vmatpush.bf16.msra.mxu0 0
      %887 = vmatpush.bf16.msra.mxu0 0
      %888 = vmatpush.bf16.msra.mxu0 0
      %889 = vmatpush.bf16.msra.mxu0 0
      %890 = vmatpush.bf16.msra.mxu0 %v853
      %891 = vmatmul.bf16.gmra.mxu0 %v844
      %v892 = vpop.f32.mrf.mxu0
      %v893 = vadd.f32 0.0, %v892
      %v894 = vpop.f32.mrf.mxu0
      %v895 = vadd.f32 0.0, %v894
      %896 = vdwg.mxu0
      %v897 = vadd.f32 %v811, %v865
      %v898 = vadd.f32 %v812, %v879
      %v899 = vadd.f32 %v813, %v893
      %v900 = vadd.f32 %v814, %v867
      %v901 = vadd.f32 %v815, %v881
      %v902 = vadd.f32 %v816, %v895
      %s903 = scalar_lea.vmem %s1, 64
      %v904 = vld [vmem:[%s903] sm:$0xf]
      %v905 = vld [vmem:[%s903 + $0x4] sm:$0xf]
      %v906 = vld [vmem:[#allocation2] sm:$0x3f]
      %v909 = vunpack.c.l.b16 %v904
      %v910 = vunpack.c.l.b16 %v905
      %v911 = vpack.c.b16 %v910, %v909
      %913 = vst [vmem:[#allocation1] ss:$4 sm:$0xff] %v906
      %v914 = vld.sshfl [vmem:[#allocation1] sm:$0xff pattern:$0x73625140]
      %v916 = vld.sshfl [vmem:[#allocation1 + $0x8] sm:$0xff pattern:$0x73625140]
      %v918 = vld.sshfl [vmem:[#allocation1 + $0x10] sm:$0xff pattern:$0x73625140]
      %920 = vrot.lane.b32.xlu0 %v914, 90
      %v921 = vpop.permute.xlu0 %920
      %922 = vrot.lane.b32.xlu0 %v916, 90
      %v923 = vpop.permute.xlu0 %922
      %924 = vrot.lane.b32.xlu0 %v918, 90
      %v925 = vpop.permute.xlu0 %924
      %vm926 = vcmask 736256
      %v927 = vsel %vm926, %v921, %v923
      %v928 = vsel %vm926, %v923, %v925
      %v930 = vsel %vm272, %v911, 0
      %v933 = vsel %vm227, %v927, 0
      %v936 = vsel %vm227, %v928, 0
      %v939 = vsel %vm227, %v925, 0
      %941 = vmatpush.bf16.msra.mxu0 0
      %942 = vmatpush.bf16.msra.mxu0 0
      %943 = vmatpush.bf16.msra.mxu0 0
      %944 = vmatpush.bf16.msra.mxu0 0
      %945 = vmatpush.bf16.msra.mxu0 0
      %946 = vmatpush.bf16.msra.mxu0 0
      %947 = vmatpush.bf16.msra.mxu0 0
      %948 = vmatpush.bf16.msra.mxu0 %v933
      %949 = vmatmul.bf16.gmra.mxu0 %v930
      %v950 = vpop.f32.mrf.mxu0
      %v951 = vadd.f32 0.0, %v950
      %v952 = vpop.f32.mrf.mxu0
      %v953 = vadd.f32 0.0, %v952
      %954 = vdwg.mxu0
      %955 = vmatpush.bf16.msra.mxu0 0
      %956 = vmatpush.bf16.msra.mxu0 0
      %957 = vmatpush.bf16.msra.mxu0 0
      %958 = vmatpush.bf16.msra.mxu0 0
      %959 = vmatpush.bf16.msra.mxu0 0
      %960 = vmatpush.bf16.msra.mxu0 0
      %961 = vmatpush.bf16.msra.mxu0 0
      %962 = vmatpush.bf16.msra.mxu0 %v936
      %963 = vmatmul.bf16.gmra.mxu0 %v930
      %v964 = vpop.f32.mrf.mxu0
      %v965 = vadd.f32 0.0, %v964
      %v966 = vpop.f32.mrf.mxu0
      %v967 = vadd.f32 0.0, %v966
      %968 = vdwg.mxu0
      %969 = vmatpush.bf16.msra.mxu0 0
      %970 = vmatpush.bf16.msra.mxu0 0
      %971 = vmatpush.bf16.msra.mxu0 0
      %972 = vmatpush.bf16.msra.mxu0 0
      %973 = vmatpush.bf16.msra.mxu0 0
      %974 = vmatpush.bf16.msra.mxu0 0
      %975 = vmatpush.bf16.msra.mxu0 0
      %976 = vmatpush.bf16.msra.mxu0 %v939
      %977 = vmatmul.bf16.gmra.mxu0 %v930
      %v978 = vpop.f32.mrf.mxu0
      %v979 = vadd.f32 0.0, %v978
      %v980 = vpop.f32.mrf.mxu0
      %v981 = vadd.f32 0.0, %v980
      %982 = vdwg.mxu0
      %v983 = vadd.f32 %v897, %v951
      %v984 = vadd.f32 %v898, %v965
      %v985 = vadd.f32 %v899, %v979
      %v986 = vadd.f32 %v900, %v953
      %v987 = vadd.f32 %v901, %v967
      %v988 = vadd.f32 %v902, %v981
      %v989 = vld [vmem:[%s2] sm:$0xff]
      %v990 = vld [vmem:[%s2 + $0x8] sm:$0xff]
      %992 = vset.pattern.permute.xlu0 0
      %993 = vperm.xlu0 %992, %v989
      %v994 = vpop.permute.xlu0 %993
      %997 = vset.pattern.permute.xlu0 0
      %998 = vperm.xlu0 %997, %v990
      %v999 = vpop.permute.xlu0 %998
      %v1001 = vadd.f32 %v983, %v994
      %v1002 = vadd.f32 %v984, %v994
      %v1003 = vadd.f32 %v985, %v994
      %v1004 = vadd.f32 %v986, %v999
      %v1005 = vadd.f32 %v987, %v999
      %v1006 = vadd.f32 %v988, %v999
      %v1007 = vmax.f32 %v1001, 0.0
      %v1008 = vmax.f32 %v1002, 0.0
      %v1009 = vmax.f32 %v1003, 0.0
      %v1010 = vmax.f32 %v1004, 0.0
      %v1011 = vmax.f32 %v1005, 0.0
      %v1012 = vmax.f32 %v1006, 0.0
      %v1013 = vlaneseq
      %v1014 = vand.u32 %v1013, 127
      %v1015 = vadd.s32 %v1014, 128
      %v1016 = vadd.s32 %v1014, 256
      %vm1017 = vcmp.lt.s32.totalorder %v1014, 0
      %v1018 = vsub.s32 0, %v1014
      %v1019 = vsel %vm1017, %v1018, %v1014
      %v1020 = vand.u32 %v1019, 65535
      %v1021 = vshrl.u32 %v1019, 16
      %v1023 = vmul.u32 %v1020, 14564
      %v1024 = vmul.u32 %v1020, 58254
      %v1025 = vmul.u32 %v1021, 14564
      %v1026 = vmul.u32 %v1021, 58254
      %v1027 = vshll.u32 %v1024, 16
      %v1028 = vshrl.u32 %v1024, 16
      %v1029 = vshll.u32 %v1025, 16
      %v1030 = vshrl.u32 %v1025, 16
      %vm1031 = vc.u32 %v1023, %v1027
      %v1032 = vsel %vm1031, 1, 0
      %v1033 = vadd.s32 %v1023, %v1027
      %v1034 = vadd.s32 %v1026, %v1032
      %vm1035 = vc.u32 %v1033, %v1029
      %v1036 = vsel %vm1035, 1, 0
      %v1037 = vadd.s32 %v1033, %v1029
      %v1038 = vadd.s32 %v1034, %v1036
      %v1039 = vadd.s32 %v1038, %v1028
      %v1040 = vadd.s32 %v1039, %v1030
      %v1041 = vshrl.u32 %v1040, 4
      %v1042 = vmul.u32 %v1041, 18
      %v1043 = vsub.s32 %v1019, %v1042
      %v1044 = vsub.s32 0, %v1043
      %v1045 = vsel %vm1017, %v1044, %v1043
      %vm1046 = vcmp.lt.s32.totalorder %v1015, 0
      %v1047 = vsub.s32 0, %v1015
      %v1048 = vsel %vm1046, %v1047, %v1015
      %v1049 = vand.u32 %v1048, 65535
      %v1050 = vshrl.u32 %v1048, 16
      %v1052 = vmul.u32 %v1049, 14564
      %v1053 = vmul.u32 %v1049, 58254
      %v1054 = vmul.u32 %v1050, 14564
      %v1055 = vmul.u32 %v1050, 58254
      %v1056 = vshll.u32 %v1053, 16
      %v1057 = vshrl.u32 %v1053, 16
      %v1058 = vshll.u32 %v1054, 16
      %v1059 = vshrl.u32 %v1054, 16
      %vm1060 = vc.u32 %v1052, %v1056
      %v1061 = vsel %vm1060, 1, 0
      %v1062 = vadd.s32 %v1052, %v1056
      %v1063 = vadd.s32 %v1055, %v1061
      %vm1064 = vc.u32 %v1062, %v1058
      %v1065 = vsel %vm1064, 1, 0
      %v1066 = vadd.s32 %v1062, %v1058
      %v1067 = vadd.s32 %v1063, %v1065
      %v1068 = vadd.s32 %v1067, %v1057
      %v1069 = vadd.s32 %v1068, %v1059
      %v1070 = vshrl.u32 %v1069, 4
      %v1071 = vmul.u32 %v1070, 18
      %v1072 = vsub.s32 %v1048, %v1071
      %v1073 = vsub.s32 0, %v1072
      %v1074 = vsel %vm1046, %v1073, %v1072
      %vm1075 = vcmp.lt.s32.totalorder %v1016, 0
      %v1076 = vsub.s32 0, %v1016
      %v1077 = vsel %vm1075, %v1076, %v1016
      %v1078 = vand.u32 %v1077, 65535
      %v1079 = vshrl.u32 %v1077, 16
      %v1081 = vmul.u32 %v1078, 14564
      %v1082 = vmul.u32 %v1078, 58254
      %v1083 = vmul.u32 %v1079, 14564
      %v1084 = vmul.u32 %v1079, 58254
      %v1085 = vshll.u32 %v1082, 16
      %v1086 = vshrl.u32 %v1082, 16
      %v1087 = vshll.u32 %v1083, 16
      %v1088 = vshrl.u32 %v1083, 16
      %vm1089 = vc.u32 %v1081, %v1085
      %v1090 = vsel %vm1089, 1, 0
      %v1091 = vadd.s32 %v1081, %v1085
      %v1092 = vadd.s32 %v1084, %v1090
      %vm1093 = vc.u32 %v1091, %v1087
      %v1094 = vsel %vm1093, 1, 0
      %v1095 = vadd.s32 %v1091, %v1087
      %v1096 = vadd.s32 %v1092, %v1094
      %v1097 = vadd.s32 %v1096, %v1086
      %v1098 = vadd.s32 %v1097, %v1088
      %v1099 = vshrl.u32 %v1098, 4
      %v1100 = vmul.u32 %v1099, 18
      %v1101 = vsub.s32 %v1077, %v1100
      %v1102 = vsub.s32 0, %v1101
      %v1103 = vsel %vm1075, %v1102, %v1101
      %vm1104 = vcmp.ne.s32.totalorder %v1045, 0
      %vm1105 = vcmp.ne.s32.totalorder %v1074, 0
      %vm1106 = vcmp.ne.s32.totalorder %v1103, 0
      %vm1107 = vcmp.lt.s32.totalorder %v1045, 0
      %vm1108 = vcmp.lt.s32.totalorder %v1074, 0
      %vm1109 = vcmp.lt.s32.totalorder %v1103, 0
      %vm1110 = vmand %vm1107, %vm1104
      %vm1111 = vmand %vm1108, %vm1105
      %vm1112 = vmand %vm1109, %vm1106
      %v1113 = vadd.s32 %v1045, 18
      %v1114 = vadd.s32 %v1074, 18
      %v1115 = vadd.s32 %v1103, 18
      %v1116 = vsel %vm1110, %v1113, %v1045
      %v1117 = vsel %vm1111, %v1114, %v1074
      %v1118 = vsel %vm1112, %v1115, %v1103
      %vm1119 = vcmp.lt.s32.totalorder %v1116, 16
      %vm1120 = vcmp.lt.s32.totalorder %v1117, 16
      %vm1121 = vcmp.lt.s32.totalorder %v1118, 16
      %v1122 = vsel %vm1119, %v1007, 0.0
      %v1123 = vsel %vm1120, %v1008, 0.0
      %v1124 = vsel %vm1121, %v1009, 0.0
      %v1125 = vsel %vm1119, %v1010, 0.0
      %v1126 = vsel %vm1120, %v1011, 0.0
      %v1127 = vsel %vm1121, %v1012, 0.0
      %v1128 = vpack.c.bf16 %v1123, %v1122
      %v1129 = vpack.c.bf16 %v1124, %v1124
      %v1130 = vpack.c.bf16 %v1126, %v1125
      %v1131 = vpack.c.bf16 %v1127, %v1127
      %1136 = vrot.lane.b32.xlu0 %v1128, 19
      %v1137 = vpop.permute.xlu0 %1136
      %1138 = vrot.lane.b32.xlu0 %v1129, 19
      %v1139 = vpop.permute.xlu0 %1138
      %1140 = vrot.lane.b32.xlu0 %v1130, 19
      %v1141 = vpop.permute.xlu0 %1140
      %1142 = vrot.lane.b32.xlu0 %v1131, 19
      %v1143 = vpop.permute.xlu0 %1142
      %v1144 = vrot.slane %v1137, 4
      %v1145 = vrot.slane %v1141, 4
      %vm1146 = vcmask 154624
      %v1147 = vsel %vm1146, %v1144, %v1137
      %v1148 = vsel %vm1146, %v1144, %v1139
      %v1149 = vsel %vm1146, %v1145, %v1141
      %v1150 = vsel %vm1146, %v1145, %v1143
      %vm1155 = vcmask 1043608
      %vm1156 = vcmask 1047556
      %vm1157 = vmor %vm1156, %vm1155
      %1158 = vst.msk [vmem:[#allocation3] sm:$0xff] %vm1157, %v1147
      %vm1159 = vcmask 412672
      %1160 = vst.msk [vmem:[#allocation3 + $0x8] sm:$0xf] %vm1159, %v1148
      %1161 = vst.msk [vmem:[#allocation3 + $0xc] sm:$0xff] %vm1157, %v1149
      %1162 = vst.msk [vmem:[#allocation3 + $0x14] sm:$0xf] %vm1159, %v1150
      %v1163 = vld [vmem:[%s3] sm:$0xf]
      %v1164 = vld [vmem:[%s3 + $0x4] sm:$0xf]
      %v1165 = vld [vmem:[#allocation3] sm:$0xff]
      %v1166 = vld [vmem:[#allocation3 + $0x8] sm:$0xf]
      %v1167 = vld [vmem:[#allocation3 + $0xc] sm:$0xff]
      %v1168 = vld [vmem:[#allocation3 + $0x14] sm:$0xf]
      %s1169 = scalar_lea.vmem %s3, 8
      %v1170 = vld [vmem:[%s1169] sm:$0xf]
      %v1171 = vld [vmem:[%s1169 + $0x4] sm:$0xf]
      %v1174 = vunpack.c.l.b16 %v1170
      %v1175 = vunpack.c.l.b16 %v1171
      %v1176 = vpack.c.b16 %v1175, %v1174
      %v1181 = vunpack.c.l.b16 %v1165
      %v1182 = vunpack.c.h.b16 %v1165
      %v1183 = vunpack.c.l.b16 %v1166
      %v1184 = vunpack.c.l.b16 %v1167
      %v1185 = vunpack.c.h.b16 %v1167
      %v1186 = vunpack.c.l.b16 %v1168
      %v1187 = vpack.c.b16 %v1184, %v1181
      %v1188 = vpack.c.b16 %v1185, %v1182
      %v1189 = vpack.c.b16 %v1186, %v1183
      %1190 = vrot.lane.b32.xlu0 %v1187, 127
      %v1191 = vpop.permute.xlu0 %1190
      %1192 = vrot.lane.b32.xlu0 %v1188, 127
      %v1193 = vpop.permute.xlu0 %1192
      %1194 = vrot.lane.b32.xlu0 %v1189, 127
      %v1195 = vpop.permute.xlu0 %1194
      %v1196 = vsel %vm269, %v1191, %v1193
      %v1197 = vsel %vm269, %v1193, %v1195
      %vm1201 = vcmask 130048
      %v1203 = vsel %vm1201, %v1176, 0
      %1205 = vmatpush.bf16.msra.mxu0 0
      %1206 = vmatpush.bf16.msra.mxu0 0
      %1207 = vmatpush.bf16.msra.mxu0 0
      %1208 = vmatpush.bf16.msra.mxu0 0
      %1209 = vmatpush.bf16.msra.mxu0 0
      %1210 = vmatpush.bf16.msra.mxu0 0
      %1211 = vmatpush.bf16.msra.mxu0 0
      %1212 = vmatpush.bf16.msra.mxu0 %v1196
      %1213 = vmatmul.bf16.gmra.mxu0 %v1203
      %v1214 = vpop.f32.mrf.mxu0
      %v1215 = vadd.f32 0.0, %v1214
      %v1216 = vpop.f32.mrf.mxu0
      %1217 = vdwg.mxu0
      %1218 = vmatpush.bf16.msra.mxu0 0
      %1219 = vmatpush.bf16.msra.mxu0 0
      %1220 = vmatpush.bf16.msra.mxu0 0
      %1221 = vmatpush.bf16.msra.mxu0 0
      %1222 = vmatpush.bf16.msra.mxu0 0
      %1223 = vmatpush.bf16.msra.mxu0 0
      %1224 = vmatpush.bf16.msra.mxu0 0
      %1225 = vmatpush.bf16.msra.mxu0 %v1197
      %1226 = vmatmul.bf16.gmra.mxu0 %v1203
      %v1227 = vpop.f32.mrf.mxu0
      %v1228 = vadd.f32 0.0, %v1227
      %v1229 = vpop.f32.mrf.mxu0
      %1230 = vdwg.mxu0
      %1231 = vmatpush.bf16.msra.mxu0 0
      %1232 = vmatpush.bf16.msra.mxu0 0
      %1233 = vmatpush.bf16.msra.mxu0 0
      %1234 = vmatpush.bf16.msra.mxu0 0
      %1235 = vmatpush.bf16.msra.mxu0 0
      %1236 = vmatpush.bf16.msra.mxu0 0
      %1237 = vmatpush.bf16.msra.mxu0 0
      %1238 = vmatpush.bf16.msra.mxu0 %v1195
      %1239 = vmatmul.bf16.gmra.mxu0 %v1203
      %v1240 = vpop.f32.mrf.mxu0
      %v1241 = vadd.f32 0.0, %v1240
      %v1242 = vpop.f32.mrf.mxu0
      %1243 = vdwg.mxu0
      %v1246 = vunpack.c.l.b16 %v1163
      %v1247 = vunpack.c.l.b16 %v1164
      %v1248 = vpack.c.b16 %v1247, %v1246
      %v1253 = vsel %vm1201, %v1248, 0
      %1255 = vmatpush.bf16.msra.mxu0 0
      %1256 = vmatpush.bf16.msra.mxu0 0
      %1257 = vmatpush.bf16.msra.mxu0 0
      %1258 = vmatpush.bf16.msra.mxu0 0
      %1259 = vmatpush.bf16.msra.mxu0 0
      %1260 = vmatpush.bf16.msra.mxu0 0
      %1261 = vmatpush.bf16.msra.mxu0 0
      %1262 = vmatpush.bf16.msra.mxu0 %v1187
      %1263 = vmatmul.bf16.gmra.mxu0 %v1253
      %v1264 = vpop.f32.mrf.mxu0
      %v1265 = vadd.f32 %v1215, %v1264
      %v1266 = vpop.f32.mrf.mxu0
      %1267 = vdwg.mxu0
      %1268 = vmatpush.bf16.msra.mxu0 0
      %1269 = vmatpush.bf16.msra.mxu0 0
      %1270 = vmatpush.bf16.msra.mxu0 0
      %1271 = vmatpush.bf16.msra.mxu0 0
      %1272 = vmatpush.bf16.msra.mxu0 0
      %1273 = vmatpush.bf16.msra.mxu0 0
      %1274 = vmatpush.bf16.msra.mxu0 0
      %1275 = vmatpush.bf16.msra.mxu0 %v1188
      %1276 = vmatmul.bf16.gmra.mxu0 %v1253
      %v1277 = vpop.f32.mrf.mxu0
      %v1278 = vadd.f32 %v1228, %v1277
      %v1279 = vpop.f32.mrf.mxu0
      %1280 = vdwg.mxu0
      %1281 = vmatpush.bf16.msra.mxu0 0
      %1282 = vmatpush.bf16.msra.mxu0 0
      %1283 = vmatpush.bf16.msra.mxu0 0
      %1284 = vmatpush.bf16.msra.mxu0 0
      %1285 = vmatpush.bf16.msra.mxu0 0
      %1286 = vmatpush.bf16.msra.mxu0 0
      %1287 = vmatpush.bf16.msra.mxu0 0
      %1288 = vmatpush.bf16.msra.mxu0 %v1189
      %1289 = vmatmul.bf16.gmra.mxu0 %v1253
      %v1290 = vpop.f32.mrf.mxu0
      %v1291 = vadd.f32 %v1241, %v1290
      %v1292 = vpop.f32.mrf.mxu0
      %1293 = vdwg.mxu0
      %s1294 = scalar_lea.vmem %s3, 16
      %v1295 = vld [vmem:[%s1294] sm:$0xf]
      %v1296 = vld [vmem:[%s1294 + $0x4] sm:$0xf]
      %v1299 = vunpack.c.l.b16 %v1295
      %v1300 = vunpack.c.l.b16 %v1296
      %v1301 = vpack.c.b16 %v1300, %v1299
      %1302 = vrot.lane.b32.xlu0 %v1187, 126
      %v1303 = vpop.permute.xlu0 %1302
      %1304 = vrot.lane.b32.xlu0 %v1188, 126
      %v1305 = vpop.permute.xlu0 %1304
      %1306 = vrot.lane.b32.xlu0 %v1189, 126
      %v1307 = vpop.permute.xlu0 %1306
      %v1308 = vsel %vm410, %v1303, %v1305
      %v1309 = vsel %vm410, %v1305, %v1307
      %v1314 = vsel %vm1201, %v1301, 0
      %1316 = vmatpush.bf16.msra.mxu0 0
      %1317 = vmatpush.bf16.msra.mxu0 0
      %1318 = vmatpush.bf16.msra.mxu0 0
      %1319 = vmatpush.bf16.msra.mxu0 0
      %1320 = vmatpush.bf16.msra.mxu0 0
      %1321 = vmatpush.bf16.msra.mxu0 0
      %1322 = vmatpush.bf16.msra.mxu0 0
      %1323 = vmatpush.bf16.msra.mxu0 %v1308
      %1324 = vmatmul.bf16.gmra.mxu0 %v1314
      %v1325 = vpop.f32.mrf.mxu0
      %v1326 = vadd.f32 0.0, %v1325
      %v1327 = vpop.f32.mrf.mxu0
      %1328 = vdwg.mxu0
      %1329 = vmatpush.bf16.msra.mxu0 0
      %1330 = vmatpush.bf16.msra.mxu0 0
      %1331 = vmatpush.bf16.msra.mxu0 0
      %1332 = vmatpush.bf16.msra.mxu0 0
      %1333 = vmatpush.bf16.msra.mxu0 0
      %1334 = vmatpush.bf16.msra.mxu0 0
      %1335 = vmatpush.bf16.msra.mxu0 0
      %1336 = vmatpush.bf16.msra.mxu0 %v1309
      %1337 = vmatmul.bf16.gmra.mxu0 %v1314
      %v1338 = vpop.f32.mrf.mxu0
      %v1339 = vadd.f32 0.0, %v1338
      %v1340 = vpop.f32.mrf.mxu0
      %1341 = vdwg.mxu0
      %1342 = vmatpush.bf16.msra.mxu0 0
      %1343 = vmatpush.bf16.msra.mxu0 0
      %1344 = vmatpush.bf16.msra.mxu0 0
      %1345 = vmatpush.bf16.msra.mxu0 0
      %1346 = vmatpush.bf16.msra.mxu0 0
      %1347 = vmatpush.bf16.msra.mxu0 0
      %1348 = vmatpush.bf16.msra.mxu0 0
      %1349 = vmatpush.bf16.msra.mxu0 %v1307
      %1350 = vmatmul.bf16.gmra.mxu0 %v1314
      %v1351 = vpop.f32.mrf.mxu0
      %v1352 = vadd.f32 0.0, %v1351
      %v1353 = vpop.f32.mrf.mxu0
      %1354 = vdwg.mxu0
      %v1355 = vadd.f32 %v1265, %v1326
      %v1356 = vadd.f32 %v1278, %v1339
      %v1357 = vadd.f32 %v1291, %v1352
      %s1358 = scalar_lea.vmem %s3, 24
      %v1359 = vld [vmem:[%s1358] sm:$0xf]
      %v1360 = vld [vmem:[%s1358 + $0x4] sm:$0xf]
      %v1363 = vunpack.c.l.b16 %v1359
      %v1364 = vunpack.c.l.b16 %v1360
      %v1365 = vpack.c.b16 %v1364, %v1363
      %1366 = vrot.lane.b32.xlu0 %v1187, 110
      %v1367 = vpop.permute.xlu0 %1366
      %1368 = vrot.lane.b32.xlu0 %v1188, 110
      %v1369 = vpop.permute.xlu0 %1368
      %1370 = vrot.lane.b32.xlu0 %v1189, 110
      %v1371 = vpop.permute.xlu0 %1370
      %v1372 = vsel %vm496, %v1367, %v1369
      %v1373 = vsel %vm496, %v1369, %v1371
      %v1378 = vsel %vm1201, %v1365, 0
      %1380 = vmatpush.bf16.msra.mxu0 0
      %1381 = vmatpush.bf16.msra.mxu0 0
      %1382 = vmatpush.bf16.msra.mxu0 0
      %1383 = vmatpush.bf16.msra.mxu0 0
      %1384 = vmatpush.bf16.msra.mxu0 0
      %1385 = vmatpush.bf16.msra.mxu0 0
      %1386 = vmatpush.bf16.msra.mxu0 0
      %1387 = vmatpush.bf16.msra.mxu0 %v1372
      %1388 = vmatmul.bf16.gmra.mxu0 %v1378
      %v1389 = vpop.f32.mrf.mxu0
      %v1390 = vadd.f32 0.0, %v1389
      %v1391 = vpop.f32.mrf.mxu0
      %1392 = vdwg.mxu0
      %1393 = vmatpush.bf16.msra.mxu0 0
      %1394 = vmatpush.bf16.msra.mxu0 0
      %1395 = vmatpush.bf16.msra.mxu0 0
      %1396 = vmatpush.bf16.msra.mxu0 0
      %1397 = vmatpush.bf16.msra.mxu0 0
      %1398 = vmatpush.bf16.msra.mxu0 0
      %1399 = vmatpush.bf16.msra.mxu0 0
      %1400 = vmatpush.bf16.msra.mxu0 %v1373
      %1401 = vmatmul.bf16.gmra.mxu0 %v1378
      %v1402 = vpop.f32.mrf.mxu0
      %v1403 = vadd.f32 0.0, %v1402
      %v1404 = vpop.f32.mrf.mxu0
      %1405 = vdwg.mxu0
      %1406 = vmatpush.bf16.msra.mxu0 0
      %1407 = vmatpush.bf16.msra.mxu0 0
      %1408 = vmatpush.bf16.msra.mxu0 0
      %1409 = vmatpush.bf16.msra.mxu0 0
      %1410 = vmatpush.bf16.msra.mxu0 0
      %1411 = vmatpush.bf16.msra.mxu0 0
      %1412 = vmatpush.bf16.msra.mxu0 0
      %1413 = vmatpush.bf16.msra.mxu0 %v1371
      %1414 = vmatmul.bf16.gmra.mxu0 %v1378
      %v1415 = vpop.f32.mrf.mxu0
      %v1416 = vadd.f32 0.0, %v1415
      %v1417 = vpop.f32.mrf.mxu0
      %1418 = vdwg.mxu0
      %v1419 = vadd.f32 %v1355, %v1390
      %v1420 = vadd.f32 %v1356, %v1403
      %v1421 = vadd.f32 %v1357, %v1416
      %s1422 = scalar_lea.vmem %s3, 32
      %v1423 = vld [vmem:[%s1422] sm:$0xf]
      %v1424 = vld [vmem:[%s1422 + $0x4] sm:$0xf]
      %v1427 = vunpack.c.l.b16 %v1423
      %v1428 = vunpack.c.l.b16 %v1424
      %v1429 = vpack.c.b16 %v1428, %v1427
      %1430 = vrot.lane.b32.xlu0 %v1187, 109
      %v1431 = vpop.permute.xlu0 %1430
      %1432 = vrot.lane.b32.xlu0 %v1188, 109
      %v1433 = vpop.permute.xlu0 %1432
      %1434 = vrot.lane.b32.xlu0 %v1189, 109
      %v1435 = vpop.permute.xlu0 %1434
      %v1436 = vsel %vm582, %v1431, %v1433
      %v1437 = vsel %vm582, %v1433, %v1435
      %v1442 = vsel %vm1201, %v1429, 0
      %1444 = vmatpush.bf16.msra.mxu0 0
      %1445 = vmatpush.bf16.msra.mxu0 0
      %1446 = vmatpush.bf16.msra.mxu0 0
      %1447 = vmatpush.bf16.msra.mxu0 0
      %1448 = vmatpush.bf16.msra.mxu0 0
      %1449 = vmatpush.bf16.msra.mxu0 0
      %1450 = vmatpush.bf16.msra.mxu0 0
      %1451 = vmatpush.bf16.msra.mxu0 %v1436
      %1452 = vmatmul.bf16.gmra.mxu0 %v1442
      %v1453 = vpop.f32.mrf.mxu0
      %v1454 = vadd.f32 0.0, %v1453
      %v1455 = vpop.f32.mrf.mxu0
      %1456 = vdwg.mxu0
      %1457 = vmatpush.bf16.msra.mxu0 0
      %1458 = vmatpush.bf16.msra.mxu0 0
      %1459 = vmatpush.bf16.msra.mxu0 0
      %1460 = vmatpush.bf16.msra.mxu0 0
      %1461 = vmatpush.bf16.msra.mxu0 0
      %1462 = vmatpush.bf16.msra.mxu0 0
      %1463 = vmatpush.bf16.msra.mxu0 0
      %1464 = vmatpush.bf16.msra.mxu0 %v1437
      %1465 = vmatmul.bf16.gmra.mxu0 %v1442
      %v1466 = vpop.f32.mrf.mxu0
      %v1467 = vadd.f32 0.0, %v1466
      %v1468 = vpop.f32.mrf.mxu0
      %1469 = vdwg.mxu0
      %1470 = vmatpush.bf16.msra.mxu0 0
      %1471 = vmatpush.bf16.msra.mxu0 0
      %1472 = vmatpush.bf16.msra.mxu0 0
      %1473 = vmatpush.bf16.msra.mxu0 0
      %1474 = vmatpush.bf16.msra.mxu0 0
      %1475 = vmatpush.bf16.msra.mxu0 0
      %1476 = vmatpush.bf16.msra.mxu0 0
      %1477 = vmatpush.bf16.msra.mxu0 %v1435
      %1478 = vmatmul.bf16.gmra.mxu0 %v1442
      %v1479 = vpop.f32.mrf.mxu0
      %v1480 = vadd.f32 0.0, %v1479
      %v1481 = vpop.f32.mrf.mxu0
      %1482 = vdwg.mxu0
      %v1483 = vadd.f32 %v1419, %v1454
      %v1484 = vadd.f32 %v1420, %v1467
      %v1485 = vadd.f32 %v1421, %v1480
      %s1486 = scalar_lea.vmem %s3, 40
      %v1487 = vld [vmem:[%s1486] sm:$0xf]
      %v1488 = vld [vmem:[%s1486 + $0x4] sm:$0xf]
      %v1491 = vunpack.c.l.b16 %v1487
      %v1492 = vunpack.c.l.b16 %v1488
      %v1493 = vpack.c.b16 %v1492, %v1491
      %1494 = vrot.lane.b32.xlu0 %v1187, 108
      %v1495 = vpop.permute.xlu0 %1494
      %1496 = vrot.lane.b32.xlu0 %v1188, 108
      %v1497 = vpop.permute.xlu0 %1496
      %1498 = vrot.lane.b32.xlu0 %v1189, 108
      %v1499 = vpop.permute.xlu0 %1498
      %v1500 = vsel %vm668, %v1495, %v1497
      %v1501 = vsel %vm668, %v1497, %v1499
      %v1506 = vsel %vm1201, %v1493, 0
      %1508 = vmatpush.bf16.msra.mxu0 0
      %1509 = vmatpush.bf16.msra.mxu0 0
      %1510 = vmatpush.bf16.msra.mxu0 0
      %1511 = vmatpush.bf16.msra.mxu0 0
      %1512 = vmatpush.bf16.msra.mxu0 0
      %1513 = vmatpush.bf16.msra.mxu0 0
      %1514 = vmatpush.bf16.msra.mxu0 0
      %1515 = vmatpush.bf16.msra.mxu0 %v1500
      %1516 = vmatmul.bf16.gmra.mxu0 %v1506
      %v1517 = vpop.f32.mrf.mxu0
      %v1518 = vadd.f32 0.0, %v1517
      %v1519 = vpop.f32.mrf.mxu0
      %1520 = vdwg.mxu0
      %1521 = vmatpush.bf16.msra.mxu0 0
      %1522 = vmatpush.bf16.msra.mxu0 0
      %1523 = vmatpush.bf16.msra.mxu0 0
      %1524 = vmatpush.bf16.msra.mxu0 0
      %1525 = vmatpush.bf16.msra.mxu0 0
      %1526 = vmatpush.bf16.msra.mxu0 0
      %1527 = vmatpush.bf16.msra.mxu0 0
      %1528 = vmatpush.bf16.msra.mxu0 %v1501
      %1529 = vmatmul.bf16.gmra.mxu0 %v1506
      %v1530 = vpop.f32.mrf.mxu0
      %v1531 = vadd.f32 0.0, %v1530
      %v1532 = vpop.f32.mrf.mxu0
      %1533 = vdwg.mxu0
      %1534 = vmatpush.bf16.msra.mxu0 0
      %1535 = vmatpush.bf16.msra.mxu0 0
      %1536 = vmatpush.bf16.msra.mxu0 0
      %1537 = vmatpush.bf16.msra.mxu0 0
      %1538 = vmatpush.bf16.msra.mxu0 0
      %1539 = vmatpush.bf16.msra.mxu0 0
      %1540 = vmatpush.bf16.msra.mxu0 0
      %1541 = vmatpush.bf16.msra.mxu0 %v1499
      %1542 = vmatmul.bf16.gmra.mxu0 %v1506
      %v1543 = vpop.f32.mrf.mxu0
      %v1544 = vadd.f32 0.0, %v1543
      %v1545 = vpop.f32.mrf.mxu0
      %1546 = vdwg.mxu0
      %v1547 = vadd.f32 %v1483, %v1518
      %v1548 = vadd.f32 %v1484, %v1531
      %v1549 = vadd.f32 %v1485, %v1544
      %s1550 = scalar_lea.vmem %s3, 48
      %v1551 = vld [vmem:[%s1550] sm:$0xf]
      %v1552 = vld [vmem:[%s1550 + $0x4] sm:$0xf]
      %v1555 = vunpack.c.l.b16 %v1551
      %v1556 = vunpack.c.l.b16 %v1552
      %v1557 = vpack.c.b16 %v1556, %v1555
      %1558 = vrot.lane.b32.xlu0 %v1187, 92
      %v1559 = vpop.permute.xlu0 %1558
      %1560 = vrot.lane.b32.xlu0 %v1188, 92
      %v1561 = vpop.permute.xlu0 %1560
      %1562 = vrot.lane.b32.xlu0 %v1189, 92
      %v1563 = vpop.permute.xlu0 %1562
      %v1564 = vsel %vm754, %v1559, %v1561
      %v1565 = vsel %vm754, %v1561, %v1563
      %v1570 = vsel %vm1201, %v1557, 0
      %1572 = vmatpush.bf16.msra.mxu0 0
      %1573 = vmatpush.bf16.msra.mxu0 0
      %1574 = vmatpush.bf16.msra.mxu0 0
      %1575 = vmatpush.bf16.msra.mxu0 0
      %1576 = vmatpush.bf16.msra.mxu0 0
      %1577 = vmatpush.bf16.msra.mxu0 0
      %1578 = vmatpush.bf16.msra.mxu0 0
      %1579 = vmatpush.bf16.msra.mxu0 %v1564
      %1580 = vmatmul.bf16.gmra.mxu0 %v1570
      %v1581 = vpop.f32.mrf.mxu0
      %v1582 = vadd.f32 0.0, %v1581
      %v1583 = vpop.f32.mrf.mxu0
      %1584 = vdwg.mxu0
      %1585 = vmatpush.bf16.msra.mxu0 0
      %1586 = vmatpush.bf16.msra.mxu0 0
      %1587 = vmatpush.bf16.msra.mxu0 0
      %1588 = vmatpush.bf16.msra.mxu0 0
      %1589 = vmatpush.bf16.msra.mxu0 0
      %1590 = vmatpush.bf16.msra.mxu0 0
      %1591 = vmatpush.bf16.msra.mxu0 0
      %1592 = vmatpush.bf16.msra.mxu0 %v1565
      %1593 = vmatmul.bf16.gmra.mxu0 %v1570
      %v1594 = vpop.f32.mrf.mxu0
      %v1595 = vadd.f32 0.0, %v1594
      %v1596 = vpop.f32.mrf.mxu0
      %1597 = vdwg.mxu0
      %1598 = vmatpush.bf16.msra.mxu0 0
      %1599 = vmatpush.bf16.msra.mxu0 0
      %1600 = vmatpush.bf16.msra.mxu0 0
      %1601 = vmatpush.bf16.msra.mxu0 0
      %1602 = vmatpush.bf16.msra.mxu0 0
      %1603 = vmatpush.bf16.msra.mxu0 0
      %1604 = vmatpush.bf16.msra.mxu0 0
      %1605 = vmatpush.bf16.msra.mxu0 %v1563
      %1606 = vmatmul.bf16.gmra.mxu0 %v1570
      %v1607 = vpop.f32.mrf.mxu0
      %v1608 = vadd.f32 0.0, %v1607
      %v1609 = vpop.f32.mrf.mxu0
      %1610 = vdwg.mxu0
      %v1611 = vadd.f32 %v1547, %v1582
      %v1612 = vadd.f32 %v1548, %v1595
      %v1613 = vadd.f32 %v1549, %v1608
      %s1614 = scalar_lea.vmem %s3, 56
      %v1615 = vld [vmem:[%s1614] sm:$0xf]
      %v1616 = vld [vmem:[%s1614 + $0x4] sm:$0xf]
      %v1619 = vunpack.c.l.b16 %v1615
      %v1620 = vunpack.c.l.b16 %v1616
      %v1621 = vpack.c.b16 %v1620, %v1619
      %1622 = vrot.lane.b32.xlu0 %v1187, 91
      %v1623 = vpop.permute.xlu0 %1622
      %1624 = vrot.lane.b32.xlu0 %v1188, 91
      %v1625 = vpop.permute.xlu0 %1624
      %1626 = vrot.lane.b32.xlu0 %v1189, 91
      %v1627 = vpop.permute.xlu0 %1626
      %v1628 = vsel %vm840, %v1623, %v1625
      %v1629 = vsel %vm840, %v1625, %v1627
      %v1634 = vsel %vm1201, %v1621, 0
      %1636 = vmatpush.bf16.msra.mxu0 0
      %1637 = vmatpush.bf16.msra.mxu0 0
      %1638 = vmatpush.bf16.msra.mxu0 0
      %1639 = vmatpush.bf16.msra.mxu0 0
      %1640 = vmatpush.bf16.msra.mxu0 0
      %1641 = vmatpush.bf16.msra.mxu0 0
      %1642 = vmatpush.bf16.msra.mxu0 0
      %1643 = vmatpush.bf16.msra.mxu0 %v1628
      %1644 = vmatmul.bf16.gmra.mxu0 %v1634
      %v1645 = vpop.f32.mrf.mxu0
      %v1646 = vadd.f32 0.0, %v1645
      %v1647 = vpop.f32.mrf.mxu0
      %1648 = vdwg.mxu0
      %1649 = vmatpush.bf16.msra.mxu0 0
      %1650 = vmatpush.bf16.msra.mxu0 0
      %1651 = vmatpush.bf16.msra.mxu0 0
      %1652 = vmatpush.bf16.msra.mxu0 0
      %1653 = vmatpush.bf16.msra.mxu0 0
      %1654 = vmatpush.bf16.msra.mxu0 0
      %1655 = vmatpush.bf16.msra.mxu0 0
      %1656 = vmatpush.bf16.msra.mxu0 %v1629
      %1657 = vmatmul.bf16.gmra.mxu0 %v1634
      %v1658 = vpop.f32.mrf.mxu0
      %v1659 = vadd.f32 0.0, %v1658
      %v1660 = vpop.f32.mrf.mxu0
      %1661 = vdwg.mxu0
      %1662 = vmatpush.bf16.msra.mxu0 0
      %1663 = vmatpush.bf16.msra.mxu0 0
      %1664 = vmatpush.bf16.msra.mxu0 0
      %1665 = vmatpush.bf16.msra.mxu0 0
      %1666 = vmatpush.bf16.msra.mxu0 0
      %1667 = vmatpush.bf16.msra.mxu0 0
      %1668 = vmatpush.bf16.msra.mxu0 0
      %1669 = vmatpush.bf16.msra.mxu0 %v1627
      %1670 = vmatmul.bf16.gmra.mxu0 %v1634
      %v1671 = vpop.f32.mrf.mxu0
      %v1672 = vadd.f32 0.0, %v1671
      %v1673 = vpop.f32.mrf.mxu0
      %1674 = vdwg.mxu0
      %v1675 = vadd.f32 %v1611, %v1646
      %v1676 = vadd.f32 %v1612, %v1659
      %v1677 = vadd.f32 %v1613, %v1672
      %s1678 = scalar_lea.vmem %s3, 64
      %v1679 = vld [vmem:[%s1678] sm:$0xf]
      %v1680 = vld [vmem:[%s1678 + $0x4] sm:$0xf]
      %v1683 = vunpack.c.l.b16 %v1679
      %v1684 = vunpack.c.l.b16 %v1680
      %v1685 = vpack.c.b16 %v1684, %v1683
      %1686 = vrot.lane.b32.xlu0 %v1187, 90
      %v1687 = vpop.permute.xlu0 %1686
      %1688 = vrot.lane.b32.xlu0 %v1188, 90
      %v1689 = vpop.permute.xlu0 %1688
      %1690 = vrot.lane.b32.xlu0 %v1189, 90
      %v1691 = vpop.permute.xlu0 %1690
      %v1692 = vsel %vm926, %v1687, %v1689
      %v1693 = vsel %vm926, %v1689, %v1691
      %v1698 = vsel %vm1201, %v1685, 0
      %1700 = vmatpush.bf16.msra.mxu0 0
      %1701 = vmatpush.bf16.msra.mxu0 0
      %1702 = vmatpush.bf16.msra.mxu0 0
      %1703 = vmatpush.bf16.msra.mxu0 0
      %1704 = vmatpush.bf16.msra.mxu0 0
      %1705 = vmatpush.bf16.msra.mxu0 0
      %1706 = vmatpush.bf16.msra.mxu0 0
      %1707 = vmatpush.bf16.msra.mxu0 %v1692
      %1708 = vmatmul.bf16.gmra.mxu0 %v1698
      %v1709 = vpop.f32.mrf.mxu0
      %v1710 = vadd.f32 0.0, %v1709
      %v1711 = vpop.f32.mrf.mxu0
      %1712 = vdwg.mxu0
      %1713 = vmatpush.bf16.msra.mxu0 0
      %1714 = vmatpush.bf16.msra.mxu0 0
      %1715 = vmatpush.bf16.msra.mxu0 0
      %1716 = vmatpush.bf16.msra.mxu0 0
      %1717 = vmatpush.bf16.msra.mxu0 0
      %1718 = vmatpush.bf16.msra.mxu0 0
      %1719 = vmatpush.bf16.msra.mxu0 0
      %1720 = vmatpush.bf16.msra.mxu0 %v1693
      %1721 = vmatmul.bf16.gmra.mxu0 %v1698
      %v1722 = vpop.f32.mrf.mxu0
      %v1723 = vadd.f32 0.0, %v1722
      %v1724 = vpop.f32.mrf.mxu0
      %1725 = vdwg.mxu0
      %1726 = vmatpush.bf16.msra.mxu0 0
      %1727 = vmatpush.bf16.msra.mxu0 0
      %1728 = vmatpush.bf16.msra.mxu0 0
      %1729 = vmatpush.bf16.msra.mxu0 0
      %1730 = vmatpush.bf16.msra.mxu0 0
      %1731 = vmatpush.bf16.msra.mxu0 0
      %1732 = vmatpush.bf16.msra.mxu0 0
      %1733 = vmatpush.bf16.msra.mxu0 %v1691
      %1734 = vmatmul.bf16.gmra.mxu0 %v1698
      %v1735 = vpop.f32.mrf.mxu0
      %v1736 = vadd.f32 0.0, %v1735
      %v1737 = vpop.f32.mrf.mxu0
      %1738 = vdwg.mxu0
      %v1739 = vadd.f32 %v1675, %v1710
      %v1740 = vadd.f32 %v1676, %v1723
      %v1741 = vadd.f32 %v1677, %v1736
      %v1742 = vld [vmem:[%s4] sm:$0xff]
      %1744 = vset.pattern.permute.xlu0 0
      %1745 = vperm.xlu0 %1744, %v1742
      %v1746 = vpop.permute.xlu0 %1745
      %v1748 = vadd.f32 %v1739, %v1746
      %v1749 = vadd.f32 %v1740, %v1746
      %v1750 = vadd.f32 %v1741, %v1746
      %v1753 = vrot.slane %v1749, 4
      %vm1754 = vcmask 1043456
      %v1755 = vsel %vm1754, %v1748, %v1753
      %1757 = vst [vmem:[%s224] sm:$0xff] %v1755
      %vm1758 = vcmask 257024
      %1759 = vst.msk [vmem:[%s224 + $0x8] sm:$0xf] %vm1758, %v1750
      %p1760 = scmp.lt.s32.totalorder %s16, 1
      %s1761 = scalar_select %p1760, %s16, 1
      %s1762 = smul.addr %s1761, 3
      %s1763 = smul.addr %s1762, 4
      %s1764 = scalar_lea.vmem %s5, %s1763
      // Predicated region
      $region41: #{res2_forward.1} parent=39 // pred_check
        %p1765 = pneg %p144
      $region42: #{res2_forward.1} parent=39 // pred_check_branch
        %1767 = sbr.rel (%p1765) target = $region44
      $region43: #{res2_forward.1} parent=39 // pred_region
        _
      $region44: #{res2_forward.1} parent=39 // pred_fallthru
        _
    $region40: #{res2_forward.1} parent=5 // pred_fallthru
      _
    %p1768 = scmp.le.s32.totalorder 2, %s11
    // Predicated region
    $region45: #{res2_forward.1} parent=5 // pred_check
      %p1769 = pneg %p1768
    $region46: #{res2_forward.1} parent=5 // pred_check_branch
      %1771 = sbr.rel (%p1769) target = $region48
    $region47: #{res2_forward.1} parent=5 // pred_region
      %s1772 = ssub.s32 %s11, 2
      // Predicated region
      $region49: #{res2_forward.1} parent=47 // pred_check
        %p1773 = pneg %p150
      $region50: #{res2_forward.1} parent=47 // pred_check_branch
        %1775 = sbr.rel (%p1773) target = $region52
      $region51: #{res2_forward.1} parent=47 // pred_region
        %p1776 = scmp.lt.s32.totalorder %s17, 1
        %s1777 = scalar_select %p1776, %s17, 1
        %s1778 = smul.addr %s1777, 3
        %s1779 = smul.addr %s1778, 4
        %s1780 = scalar_lea.vmem %s5, %s1779
      $region52: #{res2_forward.1} parent=47 // pred_fallthru
        _
    $region48: #{res2_forward.1} parent=5 // pred_fallthru
      _
  $region6: #{res2_forward.1} parent=0 // loop_footer
    %s15 = sadd.s32 1, %s11
  $region7: #{res2_forward.1} parent=0 // loop_footer_branch
    %10 = sbr.rel target = $region3
  $region8: #{res2_forward.1} parent=0 // loop_exit
    _

</llo_original>
